<compile_context>
chip_gen: v7x
topology: tpu7x:2x2x1
jax: 0.10.0
libtpu: 0.0.40
codegen_flags: <defaults>
</compile_context>

<pallas_src>
import functools

import numpy as np

import jax
import jax.numpy as jnp
from jax.experimental import pallas as pl
from jax.experimental.pallas import tpu as pltpu


def _round_up(x, m):
    return (x + m - 1) // m * m


# ---------------------------------------------------------------------------
# Pallas kernel: entire ColRoPose forward, one batch image per grid step
# ---------------------------------------------------------------------------
def _colropose_kernel(cols_ref, wb_ref, bb_ref, cmask_ref, wd_ref, bd_ref,
                      wfin_ref, bfin_ref, out_ref, fbuf_ref, *, wf_sp, pad_rows):
    f32 = jnp.float32
    bf16 = jnp.bfloat16
    m = cols_ref.shape[0]        # spatial positions of the low-res feature map
    cf = wb_ref.shape[1]         # backbone feature channels
    n_dec = wd_ref.shape[1]      # 4 parities x (ropose + human) head channels

    # 1) backbone: 3x3 stride-2 conv (rows = precomputed im2col patches) + ReLU
    feat = jnp.dot(cols_ref[...], wb_ref[...], preferred_element_type=f32)
    feat = jnp.maximum(feat + bb_ref[...], 0.0)                     # (m, cf) f32

    # Stage feat in a zero-padded VMEM scratch so every one of the 9 conv taps of
    # the fused deconv stage is just a shifted row-slice of this buffer (rows that
    # fall outside the feature map read the zero padding).  Replaces the previous
    # O(m^2) shift-matrix matmuls on the MXU with cheap slice + mask VPU work.
    fbuf_ref[...] = jnp.zeros_like(fbuf_ref)
    fbuf_ref[pl.ds(pad_rows, m), :] = feat
    feat_bf = feat.astype(bf16)

    # 2+3) fused "deconv" stage for BOTH heads and all 4 output parities:
    #      accumulate the 9 shifted taps against the parity/head-fused weight
    #      block (N = n_dec = 256, matching the 256-wide MXU).
    acc = jnp.zeros((m, n_dec), f32)
    for t in range(9):
        da, db = t // 3 - 1, t % 3 - 1
        delta = da * wf_sp + db
        if delta == 0:
            tap = feat_bf
        else:
            tap = fbuf_ref[pl.ds(pad_rows + delta, m), :]           # shifted rows
            if db == -1:                                            # zero columns that
                tap = tap * cmask_ref[:, 0:1]                       # wrapped across the
            elif db == 1:                                           # row boundary
                tap = tap * cmask_ref[:, 1:2]
            tap = tap.astype(bf16)
        acc = acc + jnp.dot(tap, wd_ref[t * cf:(t + 1) * cf, :],
                            preferred_element_type=f32)
    h = jnp.maximum(acc + bd_ref[...], 0.0).astype(bf16)            # (m, n_dec)

    # 4) fused 1x1 heatmap convs (block-diagonal weight), lane-dense N=128 store
    out = jnp.dot(h, wfin_ref[...], preferred_element_type=f32) + bfin_ref[...]
    out_ref[...] = out.astype(out_ref.dtype)


# ---------------------------------------------------------------------------
# Host-side constant / weight folding helpers
# ---------------------------------------------------------------------------
# Tap-combination coefficients of (2x nearest upsample -> 3x3 conv) rewritten as a
# stride-1 conv on the low-res feature map, per output row/col parity.
# _PARITY_COMB[parity, feat_offset(-1/0/+1), conv_tap(0..2)]
_PARITY_COMB = np.array(
    [[[1, 0, 0], [0, 1, 1], [0, 0, 0]],       # even output row / col
     [[0, 0, 0], [1, 1, 0], [0, 0, 1]]],      # odd  output row / col
    np.float32)


def _build_col_mask(hf, wf):
    """(m, 2) 0/1 mask: column 0 valid where the db=-1 shift stays inside the row,
    column 1 valid where the db=+1 shift stays inside the row."""
    m = hf * wf
    w = np.arange(m) % wf
    return np.stack([(w >= 1), (w <= wf - 2)], axis=1).astype(np.float32)


def _im2col_stride2(x_nhwc):
    """3x3 / stride-2 / pad-1 patch extraction for the backbone conv (input only)."""
    B, H, W, C = x_nhwc.shape
    Ho, Wo = H // 2, W // 2
    xp = jnp.pad(x_nhwc, ((0, 0), (1, 1), (1, 1), (0, 0)))
    cols = [xp[:, i:i + 2 * Ho:2, j:j + 2 * Wo:2, :]
            for i in range(3) for j in range(3)]
    return jnp.concatenate(cols, axis=-1).reshape(B * Ho * Wo, 9 * C)


# ---------------------------------------------------------------------------
# Fused forward
# ---------------------------------------------------------------------------
def col_ro_pose_forward(x_nchw, params):
    """Returns (ropose NCHW, humanpose NCHW)."""
    B, cin, H, W = x_nchw.shape
    assert H % 2 == 0 and W % 2 == 0
    hf, wf = H // 2, W // 2
    m = hf * wf
    assert m % 8 == 0

    cfeat = params["backbone_w"].shape[-1]
    chead = params["ropose_deconv_w"].shape[-1]
    assert params["human_deconv_w"].shape[-1] == chead
    kr = params["ropose_final_w"].shape[-1]
    kh = params["human_final_w"].shape[-1]
    ktot = kr + kh
    n_dec = 4 * 2 * chead                     # 4 parities x 2 heads
    n_out = _round_up(4 * ktot, 128)          # lane-dense output width
    pad_rows = _round_up(wf + 1, 8)           # zero padding rows in the scratch

    bf16, f32 = jnp.bfloat16, jnp.float32

    # ---- weight folding (weights only; tiny, would be precomputed offline) ----
    comb = jnp.asarray(_PARITY_COMB)

    wb = params["backbone_w"].reshape(-1, cfeat)            # (9*cin, cfeat)
    kb = wb.shape[0]
    kb_pad = _round_up(kb, 128)
    wb_p = jnp.pad(wb, ((0, kb_pad - kb), (0, 0))).astype(bf16)
    bb = params["backbone_b"].reshape(1, cfeat).astype(f32)

    def _eff(w):   # (3,3,cfeat,chead) -> (r,s,ia,ib,cfeat,chead) per-parity weights
        return jnp.einsum("rad,sbe,decf->rsabcf", comb, comb, w)

    w_both = jnp.concatenate(
        [_eff(params["ropose_deconv_w"]), _eff(params["human_deconv_w"])],
        axis=-1)                                            # (2,2,3,3,cfeat,2*chead)
    w_dec = jnp.transpose(w_both, (2, 3, 4, 0, 1, 5)).reshape(9 * cfeat, n_dec)
    w_dec = w_dec.astype(bf16)
    b_dec = jnp.tile(
        jnp.concatenate([params["ropose_deconv_b"], params["human_deconv_b"]]),
        4).reshape(1, n_dec).astype(f32)

    blk = jnp.zeros((2 * chead, ktot), f32)
    blk = blk.at[:chead, :kr].set(params["ropose_final_w"])
    blk = blk.at[chead:, kr:].set(params["human_final_w"])
    w_fin = jnp.kron(jnp.eye(4, dtype=f32), blk)            # (n_dec, 4*ktot)
    w_fin = jnp.pad(w_fin, ((0, 0), (0, n_out - 4 * ktot))).astype(bf16)
    b_fin = jnp.tile(
        jnp.concatenate([params["ropose_final_b"], params["human_final_b"]]), 4)
    b_fin = jnp.pad(b_fin, (0, n_out - 4 * ktot)).reshape(1, n_out).astype(f32)

    # ---- input-side glue (raw network input only): NCHW->NHWC + im2col ----
    x = jnp.transpose(x_nchw, (0, 2, 3, 1))
    cols = _im2col_stride2(x)                               # (B*m, 9*cin)
    cols = jnp.pad(cols, ((0, 0), (0, kb_pad - kb))).astype(bf16)

    cmask = jnp.asarray(_build_col_mask(hf, wf))            # (m, 2) f32 constant

    kernel = functools.partial(_colropose_kernel, wf_sp=wf, pad_rows=pad_rows)

    out2d = pl.pallas_call(
        kernel,
        out_shape=jax.ShapeDtypeStruct((B * m, n_out), f32),
        grid_spec=pltpu.PrefetchScalarGridSpec(
            num_scalar_prefetch=0,
            grid=(B,),
            in_specs=[
                pl.BlockSpec((m, kb_pad), lambda b: (b, 0)),          # im2col rows
                pl.BlockSpec((kb_pad, cfeat), lambda b: (0, 0)),      # backbone W
                pl.BlockSpec((1, cfeat), lambda b: (0, 0)),           # backbone b
                pl.BlockSpec((m, 2), lambda b: (0, 0)),               # column masks
                pl.BlockSpec((9 * cfeat, n_dec), lambda b: (0, 0)),   # fused deconv W
                pl.BlockSpec((1, n_dec), lambda b: (0, 0)),           # fused deconv b
                pl.BlockSpec((n_dec, n_out), lambda b: (0, 0)),       # fused 1x1 W
                pl.BlockSpec((1, n_out), lambda b: (0, 0)),           # fused 1x1 b
            ],
            out_specs=pl.BlockSpec((m, n_out), lambda b: (b, 0)),
            scratch_shapes=[pltpu.VMEM((m + 2 * pad_rows, cfeat), f32)],
        ),
        compiler_params=pltpu.CompilerParams(
            dimension_semantics=("parallel",)),   # use both TCs on v7x; harmless elsewhere
    )(cols, wb_p, bb, cmask, w_dec, b_dec, w_fin, b_fin)

    # ---- output-side glue: undo the (parity, head) packing (tiny tensor) ----
    out = out2d[:, :4 * ktot].reshape(B, hf, wf, 2, 2, ktot)   # (b, a, w, r, s, k)
    out = jnp.transpose(out, (0, 1, 3, 2, 4, 5)).reshape(B, H, W, ktot)
    ropose = jnp.transpose(out[..., :kr], (0, 3, 1, 2))
    human = jnp.transpose(out[..., kr:], (0, 3, 1, 2))
    return ropose, human


# ---------------------------------------------------------------------------
# Pure-JAX f32 reference (same synthetic semantics) for validation
# ---------------------------------------------------------------------------
def _conv_nhwc(x, w, b, stride, pad):
    out = jax.lax.conv_general_dilated(
        x, w, window_strides=(stride, stride),
        padding=((pad, pad), (pad, pad)),
        dimension_numbers=("NHWC", "HWIO", "NHWC"))
    return out + b


def ref_forward(x_nchw, params):
    x = jnp.transpose(x_nchw, (0, 2, 3, 1))
    feat = jax.nn.relu(_conv_nhwc(x, params["backbone_w"],
                                  params["backbone_b"], 2, 1))
    outs = []
    for name in ("ropose", "human"):
        up = jnp.repeat(jnp.repeat(feat, 2, axis=1), 2, axis=2)
        h = jax.nn.relu(_conv_nhwc(up, params[f"{name}_deconv_w"],
                                   params[f"{name}_deconv_b"], 1, 1))
        o = jnp.einsum("bhwc,ck->bhwk", h, params[f"{name}_final_w"])
        o = o + params[f"{name}_final_b"]
        outs.append(jnp.transpose(o, (0, 3, 1, 2)))
    return tuple(outs)


# ---------------------------------------------------------------------------
# Deterministic parameter construction
# ---------------------------------------------------------------------------
def make_params(cin=4, cfeat=32, chead=32, k_ropose=7, k_human=17):
    key = jax.random.PRNGKey(0)
    ks = jax.random.split(key, 10)

    def w_init(k, fan_in, shape):
        return jax.random.normal(k, shape, jnp.float32) * (2.0 / fan_in) ** 0.5

    def b_init(k, shape):
        return 0.1 * jax.random.normal(k, shape, jnp.float32)

    p = {}
    p["backbone_w"] = w_init(ks[0], 9 * cin, (3, 3, cin, cfeat))
    p["backbone_b"] = b_init(ks[1], (cfeat,))
    for i, (name, kpts) in enumerate([("ropose", k_ropose), ("human", k_human)]):
        p[f"{name}_deconv_w"] = w_init(ks[2 + 4 * i], 9 * cfeat,
                                       (3, 3, cfeat, chead))
        p[f"{name}_deconv_b"] = b_init(ks[3 + 4 * i], (chead,))
        p[f"{name}_final_w"] = w_init(ks[4 + 4 * i], chead, (chead, kpts))
        p[f"{name}_final_b"] = b_init(ks[5 + 4 * i], (kpts,))
    return p


if __name__ == "__main__":
    B, C, H, W = 2, 4, 16, 16
    key = jax.random.PRNGKey(0)
    x = jax.random.normal(key, (B, C, H, W), jnp.float32)

    params = make_params(cin=C)

    fwd = jax.jit(col_ro_pose_forward)
    ropose_out, human_out = fwd(x, params)
    jax.block_until_ready((ropose_out, human_out))

    assert ropose_out.shape == (B, 7, 16, 16), ropose_out.shape
    assert human_out.shape == (B, 17, 16, 16), human_out.shape
    assert bool(jnp.all(jnp.isfinite(ropose_out)))
    assert bool(jnp.all(jnp.isfinite(human_out)))

    # validate against the pure-JAX f32 reference (kernel uses bf16 matmul inputs)
    ro_ref, hu_ref = ref_forward(x, params)
    assert bool(jnp.allclose(ropose_out, ro_ref, rtol=1e-1, atol=1e-1)), (
        "ropose max|diff| =", float(jnp.max(jnp.abs(ropose_out - ro_ref))))
    assert bool(jnp.allclose(human_out, hu_ref, rtol=1e-1, atol=1e-1)), (
        "human max|diff| =", float(jnp.max(jnp.abs(human_out - hu_ref))))

    print("KERNEL_OK")
</pallas_src>

<mosaic_0001>
module attributes {stable_mosaic.version = 11 : i64} {
  func.func @_colropose_kernel(%arg0: i32, %arg1: memref<64x128xbf16, #tpu.memory_space<vmem>>, %arg2: memref<128x32xbf16, #tpu.memory_space<vmem>>, %arg3: memref<1x32xf32, #tpu.memory_space<vmem>>, %arg4: memref<64x2xf32, #tpu.memory_space<vmem>>, %arg5: memref<288x256xbf16, #tpu.memory_space<vmem>>, %arg6: memref<1x256xf32, #tpu.memory_space<vmem>>, %arg7: memref<256x128xbf16, #tpu.memory_space<vmem>>, %arg8: memref<1x128xf32, #tpu.memory_space<vmem>>, %arg9: memref<64x128xf32, #tpu.memory_space<vmem>>, %arg10: memref<96x32xf32, #tpu.memory_space<vmem>>) attributes {dimension_semantics = [#tpu.dimension_semantics<parallel>], iteration_bounds = array<i64: 2>, scalar_prefetch = 0 : i64, scratch_operands = 1 : i64, tpu.core_type = #tpu.core_type<tc>, window_params = [{transform_indices = @transform_0, window_bounds = array<i64: 64, 128>}, {pipeline_mode = #tpu.pipeline_mode<synchronous>, transform_indices = @transform_1, window_bounds = array<i64: 128, 32>}, {pipeline_mode = #tpu.pipeline_mode<synchronous>, transform_indices = @transform_2, window_bounds = array<i64: 1, 32>}, {pipeline_mode = #tpu.pipeline_mode<synchronous>, transform_indices = @transform_3, window_bounds = array<i64: 64, 2>}, {pipeline_mode = #tpu.pipeline_mode<synchronous>, transform_indices = @transform_4, window_bounds = array<i64: 288, 256>}, {pipeline_mode = #tpu.pipeline_mode<synchronous>, transform_indices = @transform_5, window_bounds = array<i64: 1, 256>}, {pipeline_mode = #tpu.pipeline_mode<synchronous>, transform_indices = @transform_6, window_bounds = array<i64: 256, 128>}, {pipeline_mode = #tpu.pipeline_mode<synchronous>, transform_indices = @transform_7, window_bounds = array<i64: 1, 128>}, {transform_indices = @transform_8, window_bounds = array<i64: 64, 128>}]} {
    %c0 = arith.constant 0 : index
    %c0_0 = arith.constant 0 : index
    %0 = vector.load %arg1[%c0, %c0_0] : memref<64x128xbf16, #tpu.memory_space<vmem>>, vector<64x128xbf16>
    %c0_1 = arith.constant 0 : index
    %c0_2 = arith.constant 0 : index
    %1 = vector.load %arg2[%c0_1, %c0_2] : memref<128x32xbf16, #tpu.memory_space<vmem>>, vector<128x32xbf16>
    %cst = arith.constant dense<0.000000e+00> : vector<64x32xf32>
    %2 = tpu.matmul %0, %1, %cst {dimension_numbers = #tpu.dot_dimension_numbers<[1], [0], [0], [1], [0, 0, 1, 1], [], []>} : vector<64x128xbf16>, vector<128x32xbf16>, vector<64x32xf32> -> vector<64x32xf32>
    %c0_3 = arith.constant 0 : index
    %c0_4 = arith.constant 0 : index
    %3 = vector.load %arg3[%c0_3, %c0_4] : memref<1x32xf32, #tpu.memory_space<vmem>>, vector<1x32xf32>
    %4 = vector.broadcast %3 : vector<1x32xf32> to vector<64x32xf32>
    %5 = arith.addf %2, %4 : vector<64x32xf32>
    %cst_5 = arith.constant 0.000000e+00 : f32
    %6 = vector.broadcast %cst_5 : f32 to vector<64x32xf32>
    %7 = arith.maximumf %5, %6 : vector<64x32xf32>
    %cst_6 = arith.constant 0.000000e+00 : f32
    %8 = vector.broadcast %cst_6 : f32 to vector<96x32xf32>
    %c0_7 = arith.constant 0 : index
    %c0_8 = arith.constant 0 : index
    %9 = vector.load %arg10[%c0_7, %c0_8] : memref<96x32xf32, #tpu.memory_space<vmem>>, vector<96x32xf32>
    tpu.vector_store %arg10[%c0_7, %c0_8], %8 {strides = array<i32>} : memref<96x32xf32, #tpu.memory_space<vmem>>, vector<96x32xf32>,
    %c16 = arith.constant 16 : index
    %c0_9 = arith.constant 0 : index
    %10 = vector.load %arg10[%c16, %c0_9] : memref<96x32xf32, #tpu.memory_space<vmem>>, vector<64x32xf32>
    tpu.vector_store %arg10[%c16, %c0_9], %7 {strides = array<i32>} : memref<96x32xf32, #tpu.memory_space<vmem>>, vector<64x32xf32>,
    %11 = arith.truncf %7 : vector<64x32xf32> to vector<64x32xbf16>
    %cst_10 = arith.constant 0.000000e+00 : f32
    %12 = vector.broadcast %cst_10 : f32 to vector<64x256xf32>
    %c7 = arith.constant 7 : index
    %c0_11 = arith.constant 0 : index
    %13 = vector.load %arg10[%c7, %c0_11] : memref<96x32xf32, #tpu.memory_space<vmem>>, vector<64x32xf32>
    %c0_12 = arith.constant 0 : index
    %c0_13 = arith.constant 0 : index
    %14 = vector.load %arg4[%c0_12, %c0_13] : memref<64x2xf32, #tpu.memory_space<vmem>>, vector<64x1xf32>
    %15 = vector.broadcast %14 : vector<64x1xf32> to vector<64x32xf32>
    %16 = arith.mulf %13, %15 : vector<64x32xf32>
    %17 = arith.truncf %16 : vector<64x32xf32> to vector<64x32xbf16>
    %c0_14 = arith.constant 0 : index
    %c0_15 = arith.constant 0 : index
    %18 = vector.load %arg5[%c0_14, %c0_15] : memref<288x256xbf16, #tpu.memory_space<vmem>>, vector<32x256xbf16>
    %cst_16 = arith.constant dense<0.000000e+00> : vector<64x256xf32>
    %19 = tpu.matmul %17, %18, %cst_16 {dimension_numbers = #tpu.dot_dimension_numbers<[1], [0], [0], [1], [0, 0, 1, 1], [], []>} : vector<64x32xbf16>, vector<32x256xbf16>, vector<64x256xf32> -> vector<64x256xf32>
    %20 = arith.addf %12, %19 : vector<64x256xf32>
    %c8 = arith.constant 8 : index
    %c0_17 = arith.constant 0 : index
    %21 = vector.load %arg10[%c8, %c0_17] : memref<96x32xf32, #tpu.memory_space<vmem>>, vector<64x32xf32>
    %22 = arith.truncf %21 : vector<64x32xf32> to vector<64x32xbf16>
    %c32 = arith.constant 32 : index
    %c0_18 = arith.constant 0 : index
    %23 = vector.load %arg5[%c32, %c0_18] : memref<288x256xbf16, #tpu.memory_space<vmem>>, vector<32x256xbf16>
    %cst_19 = arith.constant dense<0.000000e+00> : vector<64x256xf32>
    %24 = tpu.matmul %22, %23, %cst_19 {dimension_numbers = #tpu.dot_dimension_numbers<[1], [0], [0], [1], [0, 0, 1, 1], [], []>} : vector<64x32xbf16>, vector<32x256xbf16>, vector<64x256xf32> -> vector<64x256xf32>
    %25 = arith.addf %20, %24 : vector<64x256xf32>
    %c9 = arith.constant 9 : index
    %c0_20 = arith.constant 0 : index
    %26 = vector.load %arg10[%c9, %c0_20] : memref<96x32xf32, #tpu.memory_space<vmem>>, vector<64x32xf32>
    %c0_21 = arith.constant 0 : index
    %c1 = arith.constant 1 : index
    %27 = vector.load %arg4[%c0_21, %c1] : memref<64x2xf32, #tpu.memory_space<vmem>>, vector<64x1xf32>
    %28 = vector.broadcast %27 : vector<64x1xf32> to vector<64x32xf32>
    %29 = arith.mulf %26, %28 : vector<64x32xf32>
    %30 = arith.truncf %29 : vector<64x32xf32> to vector<64x32xbf16>
    %c64 = arith.constant 64 : index
    %c0_22 = arith.constant 0 : index
    %31 = vector.load %arg5[%c64, %c0_22] : memref<288x256xbf16, #tpu.memory_space<vmem>>, vector<32x256xbf16>
    %cst_23 = arith.constant dense<0.000000e+00> : vector<64x256xf32>
    %32 = tpu.matmul %30, %31, %cst_23 {dimension_numbers = #tpu.dot_dimension_numbers<[1], [0], [0], [1], [0, 0, 1, 1], [], []>} : vector<64x32xbf16>, vector<32x256xbf16>, vector<64x256xf32> -> vector<64x256xf32>
    %33 = arith.addf %25, %32 : vector<64x256xf32>
    %c15 = arith.constant 15 : index
    %c0_24 = arith.constant 0 : index
    %34 = vector.load %arg10[%c15, %c0_24] : memref<96x32xf32, #tpu.memory_space<vmem>>, vector<64x32xf32>
    %c0_25 = arith.constant 0 : index
    %c0_26 = arith.constant 0 : index
    %35 = vector.load %arg4[%c0_25, %c0_26] : memref<64x2xf32, #tpu.memory_space<vmem>>, vector<64x1xf32>
    %36 = vector.broadcast %35 : vector<64x1xf32> to vector<64x32xf32>
    %37 = arith.mulf %34, %36 : vector<64x32xf32>
    %38 = arith.truncf %37 : vector<64x32xf32> to vector<64x32xbf16>
    %c96 = arith.constant 96 : index
    %c0_27 = arith.constant 0 : index
    %39 = vector.load %arg5[%c96, %c0_27] : memref<288x256xbf16, #tpu.memory_space<vmem>>, vector<32x256xbf16>
    %cst_28 = arith.constant dense<0.000000e+00> : vector<64x256xf32>
    %40 = tpu.matmul %38, %39, %cst_28 {dimension_numbers = #tpu.dot_dimension_numbers<[1], [0], [0], [1], [0, 0, 1, 1], [], []>} : vector<64x32xbf16>, vector<32x256xbf16>, vector<64x256xf32> -> vector<64x256xf32>
    %41 = arith.addf %33, %40 : vector<64x256xf32>
    %c128 = arith.constant 128 : index
    %c0_29 = arith.constant 0 : index
    %42 = vector.load %arg5[%c128, %c0_29] : memref<288x256xbf16, #tpu.memory_space<vmem>>, vector<32x256xbf16>
    %cst_30 = arith.constant dense<0.000000e+00> : vector<64x256xf32>
    %43 = tpu.matmul %11, %42, %cst_30 {dimension_numbers = #tpu.dot_dimension_numbers<[1], [0], [0], [1], [0, 0, 1, 1], [], []>} : vector<64x32xbf16>, vector<32x256xbf16>, vector<64x256xf32> -> vector<64x256xf32>
    %44 = arith.addf %41, %43 : vector<64x256xf32>
    %c17 = arith.constant 17 : index
    %c0_31 = arith.constant 0 : index
    %45 = vector.load %arg10[%c17, %c0_31] : memref<96x32xf32, #tpu.memory_space<vmem>>, vector<64x32xf32>
    %c0_32 = arith.constant 0 : index
    %c1_33 = arith.constant 1 : index
    %46 = vector.load %arg4[%c0_32, %c1_33] : memref<64x2xf32, #tpu.memory_space<vmem>>, vector<64x1xf32>
    %47 = vector.broadcast %46 : vector<64x1xf32> to vector<64x32xf32>
    %48 = arith.mulf %45, %47 : vector<64x32xf32>
    %49 = arith.truncf %48 : vector<64x32xf32> to vector<64x32xbf16>
    %c160 = arith.constant 160 : index
    %c0_34 = arith.constant 0 : index
    %50 = vector.load %arg5[%c160, %c0_34] : memref<288x256xbf16, #tpu.memory_space<vmem>>, vector<32x256xbf16>
    %cst_35 = arith.constant dense<0.000000e+00> : vector<64x256xf32>
    %51 = tpu.matmul %49, %50, %cst_35 {dimension_numbers = #tpu.dot_dimension_numbers<[1], [0], [0], [1], [0, 0, 1, 1], [], []>} : vector<64x32xbf16>, vector<32x256xbf16>, vector<64x256xf32> -> vector<64x256xf32>
    %52 = arith.addf %44, %51 : vector<64x256xf32>
    %c23 = arith.constant 23 : index
    %c0_36 = arith.constant 0 : index
    %53 = vector.load %arg10[%c23, %c0_36] : memref<96x32xf32, #tpu.memory_space<vmem>>, vector<64x32xf32>
    %c0_37 = arith.constant 0 : index
    %c0_38 = arith.constant 0 : index
    %54 = vector.load %arg4[%c0_37, %c0_38] : memref<64x2xf32, #tpu.memory_space<vmem>>, vector<64x1xf32>
    %55 = vector.broadcast %54 : vector<64x1xf32> to vector<64x32xf32>
    %56 = arith.mulf %53, %55 : vector<64x32xf32>
    %57 = arith.truncf %56 : vector<64x32xf32> to vector<64x32xbf16>
    %c192 = arith.constant 192 : index
    %c0_39 = arith.constant 0 : index
    %58 = vector.load %arg5[%c192, %c0_39] : memref<288x256xbf16, #tpu.memory_space<vmem>>, vector<32x256xbf16>
    %cst_40 = arith.constant dense<0.000000e+00> : vector<64x256xf32>
    %59 = tpu.matmul %57, %58, %cst_40 {dimension_numbers = #tpu.dot_dimension_numbers<[1], [0], [0], [1], [0, 0, 1, 1], [], []>} : vector<64x32xbf16>, vector<32x256xbf16>, vector<64x256xf32> -> vector<64x256xf32>
    %60 = arith.addf %52, %59 : vector<64x256xf32>
    %c24 = arith.constant 24 : index
    %c0_41 = arith.constant 0 : index
    %61 = vector.load %arg10[%c24, %c0_41] : memref<96x32xf32, #tpu.memory_space<vmem>>, vector<64x32xf32>
    %62 = arith.truncf %61 : vector<64x32xf32> to vector<64x32xbf16>
    %c224 = arith.constant 224 : index
    %c0_42 = arith.constant 0 : index
    %63 = vector.load %arg5[%c224, %c0_42] : memref<288x256xbf16, #tpu.memory_space<vmem>>, vector<32x256xbf16>
    %cst_43 = arith.constant dense<0.000000e+00> : vector<64x256xf32>
    %64 = tpu.matmul %62, %63, %cst_43 {dimension_numbers = #tpu.dot_dimension_numbers<[1], [0], [0], [1], [0, 0, 1, 1], [], []>} : vector<64x32xbf16>, vector<32x256xbf16>, vector<64x256xf32> -> vector<64x256xf32>
    %65 = arith.addf %60, %64 : vector<64x256xf32>
    %c25 = arith.constant 25 : index
    %c0_44 = arith.constant 0 : index
    %66 = vector.load %arg10[%c25, %c0_44] : memref<96x32xf32, #tpu.memory_space<vmem>>, vector<64x32xf32>
    %c0_45 = arith.constant 0 : index
    %c1_46 = arith.constant 1 : index
    %67 = vector.load %arg4[%c0_45, %c1_46] : memref<64x2xf32, #tpu.memory_space<vmem>>, vector<64x1xf32>
    %68 = vector.broadcast %67 : vector<64x1xf32> to vector<64x32xf32>
    %69 = arith.mulf %66, %68 : vector<64x32xf32>
    %70 = arith.truncf %69 : vector<64x32xf32> to vector<64x32xbf16>
    %c256 = arith.constant 256 : index
    %c0_47 = arith.constant 0 : index
    %71 = vector.load %arg5[%c256, %c0_47] : memref<288x256xbf16, #tpu.memory_space<vmem>>, vector<32x256xbf16>
    %cst_48 = arith.constant dense<0.000000e+00> : vector<64x256xf32>
    %72 = tpu.matmul %70, %71, %cst_48 {dimension_numbers = #tpu.dot_dimension_numbers<[1], [0], [0], [1], [0, 0, 1, 1], [], []>} : vector<64x32xbf16>, vector<32x256xbf16>, vector<64x256xf32> -> vector<64x256xf32>
    %73 = arith.addf %65, %72 : vector<64x256xf32>
    %c0_49 = arith.constant 0 : index
    %c0_50 = arith.constant 0 : index
    %74 = vector.load %arg6[%c0_49, %c0_50] : memref<1x256xf32, #tpu.memory_space<vmem>>, vector<1x256xf32>
    %75 = vector.broadcast %74 : vector<1x256xf32> to vector<64x256xf32>
    %76 = arith.addf %73, %75 : vector<64x256xf32>
    %cst_51 = arith.constant 0.000000e+00 : f32
    %77 = vector.broadcast %cst_51 : f32 to vector<64x256xf32>
    %78 = arith.maximumf %76, %77 : vector<64x256xf32>
    %79 = arith.truncf %78 : vector<64x256xf32> to vector<64x256xbf16>
    %c0_52 = arith.constant 0 : index
    %c0_53 = arith.constant 0 : index
    %80 = vector.load %arg7[%c0_52, %c0_53] : memref<256x128xbf16, #tpu.memory_space<vmem>>, vector<256x128xbf16>
    %cst_54 = arith.constant dense<0.000000e+00> : vector<64x128xf32>
    %81 = tpu.matmul %79, %80, %cst_54 {dimension_numbers = #tpu.dot_dimension_numbers<[1], [0], [0], [1], [0, 0, 1, 1], [], []>} : vector<64x256xbf16>, vector<256x128xbf16>, vector<64x128xf32> -> vector<64x128xf32>
    %c0_55 = arith.constant 0 : index
    %c0_56 = arith.constant 0 : index
    %82 = vector.load %arg8[%c0_55, %c0_56] : memref<1x128xf32, #tpu.memory_space<vmem>>, vector<1x128xf32>
    %83 = vector.broadcast %82 : vector<1x128xf32> to vector<64x128xf32>
    %84 = arith.addf %81, %83 : vector<64x128xf32>
    %c0_57 = arith.constant 0 : index
    %c0_58 = arith.constant 0 : index
    %85 = vector.load %arg9[%c0_57, %c0_58] : memref<64x128xf32, #tpu.memory_space<vmem>>, vector<64x128xf32>
    tpu.vector_store %arg9[%c0_57, %c0_58], %84 {strides = array<i32>} : memref<64x128xf32, #tpu.memory_space<vmem>>, vector<64x128xf32>,
    return
  }
  func.func @transform_0(%arg0: i32) -> (i32, i32) {
    %c0_i32 = arith.constant 0 : i32
    %c0_i32_0 = arith.constant 0 : i32
    return %arg0, %c0_i32 : i32, i32
  }
  func.func @transform_1(%arg0: i32) -> (i32, i32) {
    %c0_i32 = arith.constant 0 : i32
    %c0_i32_0 = arith.constant 0 : i32
    %c0_i32_1 = arith.constant 0 : i32
    return %c0_i32, %c0_i32_0 : i32, i32
  }
  func.func @transform_2(%arg0: i32) -> (i32, i32) {
    %c0_i32 = arith.constant 0 : i32
    %c0_i32_0 = arith.constant 0 : i32
    %c0_i32_1 = arith.constant 0 : i32
    return %c0_i32, %c0_i32_0 : i32, i32
  }
  func.func @transform_3(%arg0: i32) -> (i32, i32) {
    %c0_i32 = arith.constant 0 : i32
    %c0_i32_0 = arith.constant 0 : i32
    %c0_i32_1 = arith.constant 0 : i32
    return %c0_i32, %c0_i32_0 : i32, i32
  }
  func.func @transform_4(%arg0: i32) -> (i32, i32) {
    %c0_i32 = arith.constant 0 : i32
    %c0_i32_0 = arith.constant 0 : i32
    %c0_i32_1 = arith.constant 0 : i32
    return %c0_i32, %c0_i32_0 : i32, i32
  }
  func.func @transform_5(%arg0: i32) -> (i32, i32) {
    %c0_i32 = arith.constant 0 : i32
    %c0_i32_0 = arith.constant 0 : i32
    %c0_i32_1 = arith.constant 0 : i32
    return %c0_i32, %c0_i32_0 : i32, i32
  }
  func.func @transform_6(%arg0: i32) -> (i32, i32) {
    %c0_i32 = arith.constant 0 : i32
    %c0_i32_0 = arith.constant 0 : i32
    %c0_i32_1 = arith.constant 0 : i32
    return %c0_i32, %c0_i32_0 : i32, i32
  }
  func.func @transform_7(%arg0: i32) -> (i32, i32) {
    %c0_i32 = arith.constant 0 : i32
    %c0_i32_0 = arith.constant 0 : i32
    %c0_i32_1 = arith.constant 0 : i32
    return %c0_i32, %c0_i32_0 : i32, i32
  }
  func.func @transform_8(%arg0: i32) -> (i32, i32) {
    %c0_i32 = arith.constant 0 : i32
    %c0_i32_0 = arith.constant 0 : i32
    return %arg0, %c0_i32 : i32, i32
  }
}

</mosaic_0001>

<llo_original>
// kernel: tile.18
$region0: #{tile.18}
  #allocation0 [shape = 's32[1]{0}', space=sflag, size = 0x4, scoped, tag = 'scoped memory for tile.18']
  %s0 = inlined_call_operand.vmem [shape: f32[24], index: 0, kind: input, shape index: {}]
  %s1 = inlined_call_operand.vmem [shape: f32[4,24], index: 1, kind: output, shape index: {}]
  // Predicated region
  $region2: #{tile.18} parent=0 // pred_check
    _
  $region3: #{tile.18} parent=0 // pred_check_branch
    %3 = sbr.rel (0) target = $region5
  $region4: #{tile.18} parent=0 // pred_region
    _
  $region5: #{tile.18} parent=0 // pred_fallthru
    _
  %v4 = vld [vmem:[%s0] ss:$0 sm:$0xff]
  %5 = vst [vmem:[%s1] sm:$0xf] %v4

// kernel: tile.19
$region0: #{tile.19}
  %s0 = inlined_call_operand.vmem [shape: f32[4,24], index: 0, kind: input, shape index: {}]
  %s1 = inlined_call_operand.vmem [shape: f32[96], index: 1, kind: output, shape index: {}]
  $region1: #{tile.19} parent=0
    #allocation0 [shape = 'u8[4096]{0}', space=vmem, size = 0x1000, scoped, tag = 'scoped mem for output reshape']
    #allocation1 [shape = 'u8[4096]{0}', space=vmem, size = 0x1000, scoped, tag = 'scoped mem for input reshape']
    %s3 = sshllo.u32 0, 4
    %v4 = vld [vmem:[%s0] sm:%s3]
    %5 = vst [vmem:[#allocation1] sm:%s3] %v4
    %v6 = vld [vmem:[#allocation1] sm:$0x1]
    %vm7 = vcmask 195584
    %8 = vst.msk [vmem:[#allocation0] sm:$0x1] %vm7, %v6
    %s9 = scalar_lea.vmem [#allocation1], 3
    %v10 = vld [vmem:[%s9] sm:$0x1]
    %11 = vrot.lane.b32.xlu0 %v10, 72
    %v12 = vpop.permute.xlu0 %11
    %vm13 = vcmask 785984
    %14 = vst.msk [vmem:[#allocation0] sm:$0x1] %vm13, %v12
    %s15 = scalar_lea.vmem [#allocation1], 2
    %v16 = vld [vmem:[%s15] sm:$0x1]
    %17 = vrot.lane.b32.xlu0 %v16, 48
    %v18 = vpop.permute.xlu0 %17
    %vm19 = vcmask 589184
    %20 = vst.msk [vmem:[#allocation0] sm:$0x1] %vm19, %v18
    %s21 = scalar_lea.vmem [#allocation1], 1
    %v22 = vld [vmem:[%s21] sm:$0x1]
    %23 = vrot.lane.b32.xlu0 %v22, 24
    %v24 = vpop.permute.xlu0 %23
    %vm25 = vcmask 392384
    %26 = vst.msk [vmem:[#allocation0] sm:$0x1] %vm25, %v24
    %s28 = sshllo.u32 0, 1
    %v30 = vld [vmem:[#allocation0] sm:%s28]
    %s31 = sshllo.u32 0, 1
    %32 = vst [vmem:[%s1] sm:%s31] %v30

// kernel: tile.13
$region0: #{tile.13}
  #allocation0 [shape = 's32[1]{0}', space=sflag, size = 0x4, scoped, tag = 'scoped memory for tile.13']
  %s0 = inlined_call_operand.vmem [shape: f32[64], index: 0, kind: input, shape index: {}]
  %s1 = inlined_call_operand.vmem [shape: f32[4,64], index: 1, kind: output, shape index: {}]
  // Predicated region
  $region2: #{tile.13} parent=0 // pred_check
    _
  $region3: #{tile.13} parent=0 // pred_check_branch
    %3 = sbr.rel (0) target = $region5
  $region4: #{tile.13} parent=0 // pred_region
    _
  $region5: #{tile.13} parent=0 // pred_fallthru
    _
  %v4 = vld [vmem:[%s0] ss:$0 sm:$0xff]
  %5 = vst [vmem:[%s1] sm:$0xf] %v4

// kernel: tile.14
$region0: #{tile.14}
  %s0 = inlined_call_operand.vmem [shape: f32[4,64], index: 0, kind: input, shape index: {}]
  %s1 = inlined_call_operand.vmem [shape: f32[1,256], index: 1, kind: output, shape index: {}]
  $region1: #{tile.14} parent=0
    #allocation0 [shape = 'u8[8192]{0}', space=vmem, size = 0x2000, scoped, tag = 'scoped mem for output reshape']
    #allocation1 [shape = 'u8[4096]{0}', space=vmem, size = 0x1000, scoped, tag = 'scoped mem for input reshape']
    %s3 = sshllo.u32 0, 4
    %v4 = vld [vmem:[%s0] sm:%s3]
    %5 = vst [vmem:[#allocation1] sm:%s3] %v4
    %s6 = smov 3
    %v7 = vld [vmem:[#allocation1] ss:$2 sm:%s6]
    %vm8 = vcmask 523264
    %9 = vst.msk [vmem:[#allocation0] ss:$8 sm:$0x3] %vm8, %v7
    %s10 = scalar_lea.vmem [#allocation1], 1
    %s11 = smov 3
    %v12 = vld [vmem:[%s10] ss:$2 sm:%s11]
    %13 = vrot.lane.b32.xlu0 %v12, 64
    %v14 = vpop.permute.xlu0 %13
    %vm15 = vcmask 1048064
    %16 = vst.msk [vmem:[#allocation0] ss:$8 sm:$0x3] %vm15, %v14
    %s18 = sshllo.u32 0, 1
    %v20 = vld [vmem:[#allocation0] sm:%s18]
    %s21 = sshllo.u32 0, 1
    %22 = vst [vmem:[%s1] sm:%s21] %v20
    %s23 = scalar_lea.vmem [#allocation0], 8
    %v24 = vld [vmem:[%s23] sm:%s18]
    %s25 = sshllo.u32 0, 1
    %s26 = scalar_lea.vmem %s1, 1
    %27 = vst [vmem:[%s26] sm:%s25] %v24

// kernel: col_ro_pose_forward.1
$region0: #{col_ro_pose_forward.1}
  #allocation0 [shape = 'u32[]', space=smem, size = 0x4, offset = 0x4, fixed_abs, tag = 'smem constant byte address 0x4 - core index']
  #allocation1 [shape = 'u32[144,128]{1,0:T(1,128)}', space=vmem, size = 0x12000, scoped, tag = 'internal scratch']
  #allocation2 [shape = 'f32[96,32]{1,0:T(8,128)}', space=vmem, size = 0xc000, scoped, tag = 'scratch operand']
  %s0 = inlined_call_operand.vmem [shape: bf16[128,128], index: 0, kind: input, shape index: {}]
  %s1 = inlined_call_operand.vmem [shape: bf16[128,32], index: 1, kind: input, shape index: {}]
  %s2 = inlined_call_operand.vmem [shape: f32[1,32], index: 2, kind: input, shape index: {}]
  %s3 = inlined_call_operand.vmem [shape: f32[64,2], index: 3, kind: input, shape index: {}]
  %s4 = inlined_call_operand.vmem [shape: bf16[288,256], index: 4, kind: input, shape index: {}]
  %s5 = inlined_call_operand.vmem [shape: f32[1,256], index: 5, kind: input, shape index: {}]
  %s6 = inlined_call_operand.vmem [shape: bf16[256,128], index: 6, kind: input, shape index: {}]
  %s7 = inlined_call_operand.vmem [shape: f32[1,128], index: 7, kind: input, shape index: {}]
  %s8 = inlined_call_operand.vmem [shape: f32[128,128], index: 8, kind: output, shape index: {}]
  %s9 = sld [smem:[#allocation0]]
  $region65: #{col_ro_pose_forward.1} parent=0
    _
  %s11 = ssub.s32 1, %s9
  %s12 = scalar_select 0, %s11, %s9
  loop: start=0, step=1, limit=4
  $region2: #{col_ro_pose_forward.1} parent=0 // loop_pre_header
    _
  $region3: #{col_ro_pose_forward.1} parent=0 // loop_header
    %s14 = sphi 0, %s18
    %p15 = scmp.ge.s32.totalorder %s14, 4
    %s24 = sphi 0, %s26
    %s27 = sphi 0, %s24
    %s28 = sphi 0, %s27
    %s44 = sphi 0, %s28
    %s48 = sphi 0, %s48
    %s50 = sphi 0, %s48
    %s51 = sphi 0, %s50
    %s65 = sphi 0, %s51
    %s69 = sphi 0, %s69
    %s71 = sphi 0, %s69
    %s72 = sphi 0, %s71
    %s86 = sphi 0, %s72
    %s90 = sphi 0, %s90
    %s92 = sphi 0, %s90
    %s93 = sphi 0, %s92
    %s107 = sphi 0, %s93
    %s111 = sphi 0, %s111
    %s113 = sphi 0, %s111
    %s114 = sphi 0, %s113
    %s128 = sphi 0, %s114
    %s132 = sphi 0, %s132
    %s134 = sphi 0, %s132
    %s135 = sphi 0, %s134
    %s149 = sphi 0, %s135
    %s153 = sphi 0, %s153
    %s155 = sphi 0, %s153
    %s156 = sphi 0, %s155
    %s170 = sphi 0, %s156
    %s174 = sphi 0, %s174
    %s176 = sphi 0, %s174
    %s177 = sphi 0, %s176
    %s191 = sphi 0, %s177
    %s197 = sphi 0, %s199
    %s200 = sphi 0, %s197
    %s201 = sphi 0, %s200
    %s217 = sphi 0, %s201
  $region4: #{col_ro_pose_forward.1} parent=0 // loop_header_branch
    %17 = sbr.rel (%p15) target = $region8
  $region5: #{col_ro_pose_forward.1} parent=0 // loop_body
    %s19 = ssub.s32 %s14, 1
    %s20 = ssub.s32 %s14, 2
    %s21 = sadd.s32 %s14, 1
    %s22 = ssub.s32 %s14, %s21
    %p23 = scmp.eq.s32.totalorder %s22, 0
    %s25 = sadd.s32 %s24, 1
    %s26 = scalar_select %p23, %s24, %s25
    %p29 = pneg %p23
    %p30 = scmp.eq.s32.totalorder %s14, 1
    %p31 = por %p29, %p30
    %p32 = scmp.ne.s32.totalorder %s24, %s27
    %p33 = scmp.eq.s32.totalorder %s14, 0
    %p34 = por %p32, %p33
    %p35 = scmp.ne.s32.totalorder %s24, %s27
    %p36 = scmp.eq.s32.totalorder %s19, 1
    %p37 = por %p35, %p36
    %p38 = scmp.ne.s32.totalorder %s27, %s28
    %p39 = scmp.eq.s32.totalorder %s19, 0
    %p40 = por %p38, %p39
    %p41 = scmp.ne.s32.totalorder %s27, %s28
    %p42 = scmp.eq.s32.totalorder %s20, 1
    %p43 = por %p41, %p42
    %p45 = scmp.ne.s32.totalorder %s28, %s44
    %p46 = scmp.eq.s32.totalorder %s20, 0
    %p47 = por %p45, %p46
    %s49 = sadd.s32 %s48, 1
    %p52 = scmp.eq.s32.totalorder %s14, 1
    %p53 = scmp.ne.s32.totalorder %s48, %s50
    %p54 = scmp.eq.s32.totalorder %s14, 0
    %p55 = por %p53, %p54
    %p56 = scmp.ne.s32.totalorder %s48, %s50
    %p57 = scmp.eq.s32.totalorder %s19, 1
    %p58 = por %p56, %p57
    %p59 = scmp.ne.s32.totalorder %s50, %s51
    %p60 = scmp.eq.s32.totalorder %s19, 0
    %p61 = por %p59, %p60
    %p62 = scmp.ne.s32.totalorder %s50, %s51
    %p63 = scmp.eq.s32.totalorder %s20, 1
    %p64 = por %p62, %p63
    %p66 = scmp.ne.s32.totalorder %s51, %s65
    %p67 = scmp.eq.s32.totalorder %s20, 0
    %p68 = por %p66, %p67
    %s70 = sadd.s32 %s69, 1
    %p73 = scmp.eq.s32.totalorder %s14, 1
    %p74 = scmp.ne.s32.totalorder %s69, %s71
    %p75 = scmp.eq.s32.totalorder %s14, 0
    %p76 = por %p74, %p75
    %p77 = scmp.ne.s32.totalorder %s69, %s71
    %p78 = scmp.eq.s32.totalorder %s19, 1
    %p79 = por %p77, %p78
    %p80 = scmp.ne.s32.totalorder %s71, %s72
    %p81 = scmp.eq.s32.totalorder %s19, 0
    %p82 = por %p80, %p81
    %p83 = scmp.ne.s32.totalorder %s71, %s72
    %p84 = scmp.eq.s32.totalorder %s20, 1
    %p85 = por %p83, %p84
    %p87 = scmp.ne.s32.totalorder %s72, %s86
    %p88 = scmp.eq.s32.totalorder %s20, 0
    %p89 = por %p87, %p88
    %s91 = sadd.s32 %s90, 1
    %p94 = scmp.eq.s32.totalorder %s14, 1
    %p95 = scmp.ne.s32.totalorder %s90, %s92
    %p96 = scmp.eq.s32.totalorder %s14, 0
    %p97 = por %p95, %p96
    %p98 = scmp.ne.s32.totalorder %s90, %s92
    %p99 = scmp.eq.s32.totalorder %s19, 1
    %p100 = por %p98, %p99
    %p101 = scmp.ne.s32.totalorder %s92, %s93
    %p102 = scmp.eq.s32.totalorder %s19, 0
    %p103 = por %p101, %p102
    %p104 = scmp.ne.s32.totalorder %s92, %s93
    %p105 = scmp.eq.s32.totalorder %s20, 1
    %p106 = por %p104, %p105
    %p108 = scmp.ne.s32.totalorder %s93, %s107
    %p109 = scmp.eq.s32.totalorder %s20, 0
    %p110 = por %p108, %p109
    %s112 = sadd.s32 %s111, 1
    %p115 = scmp.eq.s32.totalorder %s14, 1
    %p116 = scmp.ne.s32.totalorder %s111, %s113
    %p117 = scmp.eq.s32.totalorder %s14, 0
    %p118 = por %p116, %p117
    %p119 = scmp.ne.s32.totalorder %s111, %s113
    %p120 = scmp.eq.s32.totalorder %s19, 1
    %p121 = por %p119, %p120
    %p122 = scmp.ne.s32.totalorder %s113, %s114
    %p123 = scmp.eq.s32.totalorder %s19, 0
    %p124 = por %p122, %p123
    %p125 = scmp.ne.s32.totalorder %s113, %s114
    %p126 = scmp.eq.s32.totalorder %s20, 1
    %p127 = por %p125, %p126
    %p129 = scmp.ne.s32.totalorder %s114, %s128
    %p130 = scmp.eq.s32.totalorder %s20, 0
    %p131 = por %p129, %p130
    %s133 = sadd.s32 %s132, 1
    %p136 = scmp.eq.s32.totalorder %s14, 1
    %p137 = scmp.ne.s32.totalorder %s132, %s134
    %p138 = scmp.eq.s32.totalorder %s14, 0
    %p139 = por %p137, %p138
    %p140 = scmp.ne.s32.totalorder %s132, %s134
    %p141 = scmp.eq.s32.totalorder %s19, 1
    %p142 = por %p140, %p141
    %p143 = scmp.ne.s32.totalorder %s134, %s135
    %p144 = scmp.eq.s32.totalorder %s19, 0
    %p145 = por %p143, %p144
    %p146 = scmp.ne.s32.totalorder %s134, %s135
    %p147 = scmp.eq.s32.totalorder %s20, 1
    %p148 = por %p146, %p147
    %p150 = scmp.ne.s32.totalorder %s135, %s149
    %p151 = scmp.eq.s32.totalorder %s20, 0
    %p152 = por %p150, %p151
    %s154 = sadd.s32 %s153, 1
    %p157 = scmp.eq.s32.totalorder %s14, 1
    %p158 = scmp.ne.s32.totalorder %s153, %s155
    %p159 = scmp.eq.s32.totalorder %s14, 0
    %p160 = por %p158, %p159
    %p161 = scmp.ne.s32.totalorder %s153, %s155
    %p162 = scmp.eq.s32.totalorder %s19, 1
    %p163 = por %p161, %p162
    %p164 = scmp.ne.s32.totalorder %s155, %s156
    %p165 = scmp.eq.s32.totalorder %s19, 0
    %p166 = por %p164, %p165
    %p167 = scmp.ne.s32.totalorder %s155, %s156
    %p168 = scmp.eq.s32.totalorder %s20, 1
    %p169 = por %p167, %p168
    %p171 = scmp.ne.s32.totalorder %s156, %s170
    %p172 = scmp.eq.s32.totalorder %s20, 0
    %p173 = por %p171, %p172
    %s175 = sadd.s32 %s174, 1
    %p178 = scmp.eq.s32.totalorder %s14, 1
    %p179 = scmp.ne.s32.totalorder %s174, %s176
    %p180 = scmp.eq.s32.totalorder %s14, 0
    %p181 = por %p179, %p180
    %p182 = scmp.ne.s32.totalorder %s174, %s176
    %p183 = scmp.eq.s32.totalorder %s19, 1
    %p184 = por %p182, %p183
    %p185 = scmp.ne.s32.totalorder %s176, %s177
    %p186 = scmp.eq.s32.totalorder %s19, 0
    %p187 = por %p185, %p186
    %p188 = scmp.ne.s32.totalorder %s176, %s177
    %p189 = scmp.eq.s32.totalorder %s20, 1
    %p190 = por %p188, %p189
    %p192 = scmp.ne.s32.totalorder %s177, %s191
    %p193 = scmp.eq.s32.totalorder %s20, 0
    %p194 = por %p192, %p193
    %s195 = ssub.s32 %s14, %s21
    %p196 = scmp.eq.s32.totalorder %s195, 0
    %s198 = sadd.s32 %s197, 1
    %s199 = scalar_select %p196, %s197, %s198
    %p202 = pneg %p196
    %p203 = scmp.eq.s32.totalorder %s14, 1
    %p204 = por %p202, %p203
    %p205 = scmp.ne.s32.totalorder %s197, %s200
    %p206 = scmp.eq.s32.totalorder %s14, 0
    %p207 = por %p205, %p206
    %p208 = scmp.ne.s32.totalorder %s197, %s200
    %p209 = scmp.eq.s32.totalorder %s19, 1
    %p210 = por %p208, %p209
    %p211 = scmp.ne.s32.totalorder %s200, %s201
    %p212 = scmp.eq.s32.totalorder %s19, 0
    %p213 = por %p211, %p212
    %p214 = scmp.ne.s32.totalorder %s200, %s201
    %p215 = scmp.eq.s32.totalorder %s20, 1
    %p216 = por %p214, %p215
    %p218 = scmp.ne.s32.totalorder %s201, %s217
    %p219 = scmp.eq.s32.totalorder %s20, 0
    %p220 = por %p218, %p219
    %p221 = scmp.le.s32.totalorder 1, %s14
    %p222 = scmp.lt.s32.totalorder %s14, 3
    %p223 = pnand %p221, %p222
    %p224 = pneg %p223
    // Predicated region
    $region9: #{col_ro_pose_forward.1} parent=5 // pred_check
      _
    $region10: #{col_ro_pose_forward.1} parent=5 // pred_check_branch
      %226 = sbr.rel (%p223) target = $region12
    $region11: #{col_ro_pose_forward.1} parent=5 // pred_region
      %s227 = ssub.s32 %s14, 1
      // Predicated region
      $region13: #{col_ro_pose_forward.1} parent=11 // pred_check
        %p228 = pneg %p61
      $region14: #{col_ro_pose_forward.1} parent=11 // pred_check_branch
        %230 = sbr.rel (%p228) target = $region16
      $region15: #{col_ro_pose_forward.1} parent=11 // pred_region
        _
      $region16: #{col_ro_pose_forward.1} parent=11 // pred_fallthru
        _
      // Predicated region
      $region17: #{col_ro_pose_forward.1} parent=11 // pred_check
        %p231 = pneg %p82
      $region18: #{col_ro_pose_forward.1} parent=11 // pred_check_branch
        %233 = sbr.rel (%p231) target = $region20
      $region19: #{col_ro_pose_forward.1} parent=11 // pred_region
        _
      $region20: #{col_ro_pose_forward.1} parent=11 // pred_fallthru
        _
      // Predicated region
      $region21: #{col_ro_pose_forward.1} parent=11 // pred_check
        %p234 = pneg %p103
      $region22: #{col_ro_pose_forward.1} parent=11 // pred_check_branch
        %236 = sbr.rel (%p234) target = $region24
      $region23: #{col_ro_pose_forward.1} parent=11 // pred_region
        _
      $region24: #{col_ro_pose_forward.1} parent=11 // pred_fallthru
        _
      // Predicated region
      $region25: #{col_ro_pose_forward.1} parent=11 // pred_check
        %p237 = pneg %p124
      $region26: #{col_ro_pose_forward.1} parent=11 // pred_check_branch
        %239 = sbr.rel (%p237) target = $region28
      $region27: #{col_ro_pose_forward.1} parent=11 // pred_region
        _
      $region28: #{col_ro_pose_forward.1} parent=11 // pred_fallthru
        _
      // Predicated region
      $region29: #{col_ro_pose_forward.1} parent=11 // pred_check
        %p240 = pneg %p145
      $region30: #{col_ro_pose_forward.1} parent=11 // pred_check_branch
        %242 = sbr.rel (%p240) target = $region32
      $region31: #{col_ro_pose_forward.1} parent=11 // pred_region
        _
      $region32: #{col_ro_pose_forward.1} parent=11 // pred_fallthru
        _
      // Predicated region
      $region33: #{col_ro_pose_forward.1} parent=11 // pred_check
        %p243 = pneg %p166
      $region34: #{col_ro_pose_forward.1} parent=11 // pred_check_branch
        %245 = sbr.rel (%p243) target = $region36
      $region35: #{col_ro_pose_forward.1} parent=11 // pred_region
        _
      $region36: #{col_ro_pose_forward.1} parent=11 // pred_fallthru
        _
      // Predicated region
      $region37: #{col_ro_pose_forward.1} parent=11 // pred_check
        %p246 = pneg %p187
      $region38: #{col_ro_pose_forward.1} parent=11 // pred_check_branch
        %248 = sbr.rel (%p246) target = $region40
      $region39: #{col_ro_pose_forward.1} parent=11 // pred_region
        _
      $region40: #{col_ro_pose_forward.1} parent=11 // pred_fallthru
        _
    $region12: #{col_ro_pose_forward.1} parent=5 // pred_fallthru
      _
    %p249 = scmp.lt.s32.totalorder %s14, 2
    // Predicated region
    $region41: #{col_ro_pose_forward.1} parent=5 // pred_check
      %p250 = pneg %p249
    $region42: #{col_ro_pose_forward.1} parent=5 // pred_check_branch
      %252 = sbr.rel (%p250) target = $region44
    $region43: #{col_ro_pose_forward.1} parent=5 // pred_region
      // Predicated region
      $region45: #{col_ro_pose_forward.1} parent=43 // pred_check
        %p253 = pneg %p34
      $region46: #{col_ro_pose_forward.1} parent=43 // pred_check_branch
        %255 = sbr.rel (%p253) target = $region48
      $region47: #{col_ro_pose_forward.1} parent=43 // pred_region
        %s256 = smul.u32 8, %s14
        %p257 = scmp.lt.s32.totalorder %s256, 15
        %s258 = scalar_select %p257, %s256, 15
        %s259 = smul.addr %s258, 4
        %s260 = scalar_lea.vmem %s0, %s259
        %s261 = smul.u32 8, %s14
      $region48: #{col_ro_pose_forward.1} parent=43 // pred_fallthru
        _
    $region44: #{col_ro_pose_forward.1} parent=5 // pred_fallthru
      _
    %p262 = scmp.le.s32.totalorder 1, %s14
    %p263 = scmp.lt.s32.totalorder %s14, 3
    %p264 = pnand %p262, %p263
    %p265 = pneg %p264
    // Predicated region
    $region49: #{col_ro_pose_forward.1} parent=5 // pred_check
      _
    $region50: #{col_ro_pose_forward.1} parent=5 // pred_check_branch
      %267 = sbr.rel (%p264) target = $region52
    $region51: #{col_ro_pose_forward.1} parent=5 // pred_region
      %s268 = ssub.s32 %s14, 1
      %s269 = smul.u32 8, %s19
      %p270 = scmp.lt.s32.totalorder %s269, 15
      %s271 = scalar_select %p270, %s269, 15
      %s272 = smul.addr %s271, 4
      %s273 = scalar_lea.vmem %s0, %s272
      %p274 = pneg %p40
      %p275 = pneg %p37
      %p276 = pneg %p61
      %p277 = pneg %p58
      %p278 = pneg %p82
      %p279 = pneg %p79
      %p280 = pneg %p103
      %p281 = pneg %p100
      %p282 = pneg %p124
      %p283 = pneg %p121
      %p284 = pneg %p145
      %p285 = pneg %p142
      %p286 = pneg %p166
      %p287 = pneg %p163
      %p288 = pneg %p187
      %p289 = pneg %p184
      %p290 = pneg %p213
      %p291 = pneg %p210
      %s292 = smul.u32 8, %s19
      %p293 = scmp.lt.s32.totalorder %s292, 15
      %s294 = scalar_select %p293, %s292, 15
      %s295 = smul.addr %s294, 8
      %s296 = scalar_lea.vmem %s8, %s295
      %s297 = smul.u32 8, %s19
      %p298 = scmp.lt.s32.totalorder %s297, 15
      %s299 = scalar_select %p298, %s297, 15
      %s300 = smul.addr %s299, 4
      %s301 = scalar_lea.vmem %s0, %s300
      %s302 = smul.u32 8, %s19
      %s303 = smul.u32 8, %s19
      %p304 = scmp.lt.s32.totalorder %s303, 15
      %s305 = scalar_select %p304, %s303, 15
      %s306 = smul.addr %s305, 8
      %s307 = scalar_lea.vmem %s8, %s306
      %s308 = smul.u32 8, %s19
      %v310 = vld [vmem:[%s301] sm:$0xf]
      %v311 = vld [vmem:[%s301 + $0x4] sm:$0xf]
      %v312 = vld [vmem:[%s301 + $0x8] sm:$0xf]
      %v313 = vld [vmem:[%s301 + $0xc] sm:$0xf]
      %v314 = vld [vmem:[%s301 + $0x10] sm:$0xf]
      %v315 = vld [vmem:[%s301 + $0x14] sm:$0xf]
      %v316 = vld [vmem:[%s301 + $0x18] sm:$0xf]
      %v317 = vld [vmem:[%s301 + $0x1c] sm:$0xf]
      %v318 = vld [vmem:[%s1] sm:$0xf]
      %v319 = vld [vmem:[%s1 + $0x4] sm:$0xf]
      %v320 = vld [vmem:[%s1 + $0x8] sm:$0xf]
      %v321 = vld [vmem:[%s1 + $0xc] sm:$0xf]
      %v322 = vld [vmem:[%s1 + $0x10] sm:$0xf]
      %v323 = vld [vmem:[%s1 + $0x14] sm:$0xf]
      %v324 = vld [vmem:[%s1 + $0x18] sm:$0xf]
      %v325 = vld [vmem:[%s1 + $0x1c] sm:$0xf]
      %v326 = vld [vmem:[%s1 + $0x20] sm:$0xf]
      %v327 = vld [vmem:[%s1 + $0x24] sm:$0xf]
      %v328 = vld [vmem:[%s1 + $0x28] sm:$0xf]
      %v329 = vld [vmem:[%s1 + $0x2c] sm:$0xf]
      %v330 = vld [vmem:[%s1 + $0x30] sm:$0xf]
      %v331 = vld [vmem:[%s1 + $0x34] sm:$0xf]
      %v332 = vld [vmem:[%s1 + $0x38] sm:$0xf]
      %v333 = vld [vmem:[%s1 + $0x3c] sm:$0xf]
      %v334 = vld [vmem:[%s2] sm:$0x1]
      %v336 = vlaneseq
      %v337 = vshrl.u32 %v336, 7
      %v338 = vsub.s32 0, %v337
      %v339 = vrot.slane %v334, %v338
      %v349 = vunpack.c.l.b16 %v310
      %v350 = vunpack.c.l.b16 %v311
      %v351 = vunpack.c.l.b16 %v312
      %v352 = vunpack.c.l.b16 %v313
      %v353 = vunpack.c.l.b16 %v314
      %v354 = vunpack.c.l.b16 %v315
      %v355 = vunpack.c.l.b16 %v316
      %v356 = vunpack.c.l.b16 %v317
      %v357 = vpack.c.b16 %v350, %v349
      %v358 = vpack.c.b16 %v352, %v351
      %v359 = vpack.c.b16 %v354, %v353
      %v360 = vpack.c.b16 %v356, %v355
      %v381 = vunpack.c.l.b16 %v318
      %v382 = vunpack.c.l.b16 %v319
      %v383 = vunpack.c.l.b16 %v320
      %v384 = vunpack.c.l.b16 %v321
      %v385 = vunpack.c.l.b16 %v322
      %v386 = vunpack.c.l.b16 %v323
      %v387 = vunpack.c.l.b16 %v324
      %v388 = vunpack.c.l.b16 %v325
      %v389 = vunpack.c.l.b16 %v326
      %v390 = vunpack.c.l.b16 %v327
      %v391 = vunpack.c.l.b16 %v328
      %v392 = vunpack.c.l.b16 %v329
      %v393 = vunpack.c.l.b16 %v330
      %v394 = vunpack.c.l.b16 %v331
      %v395 = vunpack.c.l.b16 %v332
      %v396 = vunpack.c.l.b16 %v333
      %v397 = vpack.c.b16 %v382, %v381
      %v398 = vpack.c.b16 %v384, %v383
      %v399 = vpack.c.b16 %v386, %v385
      %v400 = vpack.c.b16 %v388, %v387
      %v401 = vpack.c.b16 %v390, %v389
      %v402 = vpack.c.b16 %v392, %v391
      %v403 = vpack.c.b16 %v394, %v393
      %v404 = vpack.c.b16 %v396, %v395
      %413 = vmatprep.subr.bf16.mxu0 0
      %414 = vmatpush1.bf16.msra.mxu0 %v397
      %415 = vmatprep.subr.bf16.mxu0 0
      %416 = vmatpush1.bf16.msra.mxu0 %v398
      %417 = vmatprep.subr.bf16.mxu0 0
      %418 = vmatpush1.bf16.msra.mxu0 %v399
      %419 = vmatprep.subr.bf16.mxu0 0
      %420 = vmatpush1.bf16.msra.mxu0 %v400
      %421 = vmatprep.subr.bf16.mxu0 0
      %422 = vmatpush1.bf16.msra.mxu0 %v401
      %423 = vmatprep.subr.bf16.mxu0 0
      %424 = vmatpush1.bf16.msra.mxu0 %v402
      %425 = vmatprep.subr.bf16.mxu0 0
      %426 = vmatpush1.bf16.msra.mxu0 %v403
      %427 = vmatprep.subr.bf16.mxu0 0
      %428 = vmatpush1.bf16.msra.mxu0 %v404
      %429 = vmatprep.subr.bf16.mxu0 0
      %430 = vmatpush1.bf16.msra.mxu0 0
      %431 = vmatprep.subr.bf16.mxu0 0
      %432 = vmatpush1.bf16.msra.mxu0 0
      %433 = vmatprep.subr.bf16.mxu0 0
      %434 = vmatpush1.bf16.msra.mxu0 0
      %435 = vmatprep.subr.bf16.mxu0 0
      %436 = vmatpush1.bf16.msra.mxu0 0
      %437 = vmatprep.subr.bf16.mxu0 0
      %438 = vmatpush1.bf16.msra.mxu0 0
      %439 = vmatprep.subr.bf16.mxu0 0
      %440 = vmatpush1.bf16.msra.mxu0 0
      %441 = vmatprep.subr.bf16.mxu0 0
      %442 = vmatpush1.bf16.msra.mxu0 0
      %443 = vmatprep.subr.bf16.mxu0 0
      %444 = vmatpush1.bf16.msra.mxu0 0
      %445 = vmatprep.mubr.bf16.mxu0 0
      %446 = vmatmul.mubr.bf16.gmra.mrb[0].mxu0 %v357
      %v447 = vpop.f32.mrb[0].mxu0
      %v448 = vadd.f32 %v339, %v447
      %v449 = vpop.f32.mrb[0].mxu0
      %v450 = vpop.f32.mrb[0].mxu0
      %v451 = vadd.f32 %v339, %v450
      %v452 = vpop.f32.mrb[0].mxu0
      %453 = vmatprep.mubr.bf16.mxu0 0
      %454 = vmatmul.mubr.bf16.gmra.mrb[0].mxu0 %v358
      %v455 = vpop.f32.mrb[0].mxu0
      %v456 = vadd.f32 %v339, %v455
      %v457 = vpop.f32.mrb[0].mxu0
      %v458 = vpop.f32.mrb[0].mxu0
      %v459 = vadd.f32 %v339, %v458
      %v460 = vpop.f32.mrb[0].mxu0
      %461 = vmatprep.mubr.bf16.mxu0 0
      %462 = vmatmul.mubr.bf16.gmra.mrb[0].mxu0 %v359
      %v463 = vpop.f32.mrb[0].mxu0
      %v464 = vadd.f32 %v339, %v463
      %v465 = vpop.f32.mrb[0].mxu0
      %v466 = vpop.f32.mrb[0].mxu0
      %v467 = vadd.f32 %v339, %v466
      %v468 = vpop.f32.mrb[0].mxu0
      %469 = vmatprep.mubr.bf16.mxu0 0
      %470 = vmatmul.mubr.bf16.gmra.mrb[0].mxu0 %v360
      %v471 = vpop.f32.mrb[0].mxu0
      %v472 = vadd.f32 %v339, %v471
      %v473 = vpop.f32.mrb[0].mxu0
      %v474 = vpop.f32.mrb[0].mxu0
      %v475 = vadd.f32 %v339, %v474
      %v476 = vpop.f32.mrb[0].mxu0
      %477 = vdwg.mxu0
      %v478 = vmax.f32 %v448, 0.0
      %v479 = vmax.f32 %v451, 0.0
      %v480 = vmax.f32 %v456, 0.0
      %v481 = vmax.f32 %v459, 0.0
      %v482 = vmax.f32 %v464, 0.0
      %v483 = vmax.f32 %v467, 0.0
      %v484 = vmax.f32 %v472, 0.0
      %v485 = vmax.f32 %v475, 0.0
      %vm486 = vcmask 261120
      %487 = vst.msk [vmem:[#allocation2] sm:$0xff] %vm486, 0.0
      %488 = vst.msk [vmem:[#allocation2 + $0x8] sm:$0xff] %vm486, 0.0
      %489 = vst.msk [vmem:[#allocation2 + $0x10] sm:$0xff] %vm486, 0.0
      %490 = vst.msk [vmem:[#allocation2 + $0x18] sm:$0xff] %vm486, 0.0
      %491 = vst.msk [vmem:[#allocation2 + $0x20] sm:$0xff] %vm486, 0.0
      %492 = vst.msk [vmem:[#allocation2 + $0x28] sm:$0xff] %vm486, 0.0
      %493 = vst.msk [vmem:[#allocation2 + $0x30] sm:$0xff] %vm486, 0.0
      %494 = vst.msk [vmem:[#allocation2 + $0x38] sm:$0xff] %vm486, 0.0
      %495 = vst.msk [vmem:[#allocation2 + $0x40] sm:$0xff] %vm486, 0.0
      %496 = vst.msk [vmem:[#allocation2 + $0x48] sm:$0xff] %vm486, 0.0
      %497 = vst.msk [vmem:[#allocation2 + $0x50] sm:$0xff] %vm486, 0.0
      %498 = vst.msk [vmem:[#allocation2 + $0x58] sm:$0xff] %vm486, 0.0
      %499 = vst.msk [vmem:[#allocation2 + $0x10] sm:$0xff] %vm486, %v478
      %500 = vst.msk [vmem:[#allocation2 + $0x18] sm:$0xff] %vm486, %v479
      %501 = vst.msk [vmem:[#allocation2 + $0x20] sm:$0xff] %vm486, %v480
      %502 = vst.msk [vmem:[#allocation2 + $0x28] sm:$0xff] %vm486, %v481
      %503 = vst.msk [vmem:[#allocation2 + $0x30] sm:$0xff] %vm486, %v482
      %504 = vst.msk [vmem:[#allocation2 + $0x38] sm:$0xff] %vm486, %v483
      %505 = vst.msk [vmem:[#allocation2 + $0x40] sm:$0xff] %vm486, %v484
      %506 = vst.msk [vmem:[#allocation2 + $0x48] sm:$0xff] %vm486, %v485
      %v507 = vpack.c.bf16 %v479, %v478
      %v508 = vpack.c.bf16 %v481, %v480
      %v509 = vpack.c.bf16 %v483, %v482
      %v510 = vpack.c.bf16 %v485, %v484
      %v511 = vld [vmem:[#allocation2 + $0x7] sm:$0xff]
      %v512 = vld [vmem:[#allocation2 + $0xf] sm:$0xff]
      %v513 = vld [vmem:[#allocation2 + $0x17] sm:$0xff]
      %v514 = vld [vmem:[#allocation2 + $0x1f] sm:$0xff]
      %v515 = vld [vmem:[#allocation2 + $0x27] sm:$0xff]
      %v516 = vld [vmem:[#allocation2 + $0x2f] sm:$0xff]
      %v517 = vld [vmem:[#allocation2 + $0x37] sm:$0xff]
      %v518 = vld [vmem:[#allocation2 + $0x3f] sm:$0xff]
      %v519 = vld [vmem:[%s3] sm:$0xff]
      %v520 = vld [vmem:[%s3 + $0x8] sm:$0xff]
      %v521 = vld [vmem:[%s3 + $0x10] sm:$0xff]
      %v522 = vld [vmem:[%s3 + $0x18] sm:$0xff]
      %v523 = vld [vmem:[%s3 + $0x20] sm:$0xff]
      %v524 = vld [vmem:[%s3 + $0x28] sm:$0xff]
      %v525 = vld [vmem:[%s3 + $0x30] sm:$0xff]
      %v526 = vld [vmem:[%s3 + $0x38] sm:$0xff]
      %528 = vset.pattern.permute.xlu0 0
      %529 = vperm.xlu0 %528, %v519
      %v530 = vpop.permute.xlu0 %529
      %533 = vset.pattern.permute.xlu0 0
      %534 = vperm.xlu0 %533, %v520
      %v535 = vpop.permute.xlu0 %534
      %538 = vset.pattern.permute.xlu0 0
      %539 = vperm.xlu0 %538, %v521
      %v540 = vpop.permute.xlu0 %539
      %543 = vset.pattern.permute.xlu0 0
      %544 = vperm.xlu0 %543, %v522
      %v545 = vpop.permute.xlu0 %544
      %548 = vset.pattern.permute.xlu0 0
      %549 = vperm.xlu0 %548, %v523
      %v550 = vpop.permute.xlu0 %549
      %553 = vset.pattern.permute.xlu0 0
      %554 = vperm.xlu0 %553, %v524
      %v555 = vpop.permute.xlu0 %554
      %558 = vset.pattern.permute.xlu0 0
      %559 = vperm.xlu0 %558, %v525
      %v560 = vpop.permute.xlu0 %559
      %563 = vset.pattern.permute.xlu0 0
      %564 = vperm.xlu0 %563, %v526
      %v565 = vpop.permute.xlu0 %564
      %v567 = vmul.f32 %v511, %v530
      %v568 = vmul.f32 %v512, %v535
      %v569 = vmul.f32 %v513, %v540
      %v570 = vmul.f32 %v514, %v545
      %v571 = vmul.f32 %v515, %v550
      %v572 = vmul.f32 %v516, %v555
      %v573 = vmul.f32 %v517, %v560
      %v574 = vmul.f32 %v518, %v565
      %v575 = vpack.c.bf16 %v568, %v567
      %v576 = vpack.c.bf16 %v570, %v569
      %v577 = vpack.c.bf16 %v572, %v571
      %v578 = vpack.c.bf16 %v574, %v573
      %v579 = vld [vmem:[%s4] sm:$0xff]
      %v580 = vld [vmem:[%s4 + $0x8] sm:$0xff]
      %v581 = vld [vmem:[%s4 + $0x10] sm:$0xff]
      %v582 = vld [vmem:[%s4 + $0x18] sm:$0xff]
      %v583 = vld [vmem:[#allocation2 + $0x8] sm:$0xff]
      %v584 = vld [vmem:[#allocation2 + $0x10] sm:$0xff]
      %v585 = vld [vmem:[#allocation2 + $0x18] sm:$0xff]
      %v586 = vld [vmem:[#allocation2 + $0x20] sm:$0xff]
      %v587 = vld [vmem:[#allocation2 + $0x28] sm:$0xff]
      %v588 = vld [vmem:[#allocation2 + $0x30] sm:$0xff]
      %v589 = vld [vmem:[#allocation2 + $0x38] sm:$0xff]
      %v590 = vld [vmem:[#allocation2 + $0x40] sm:$0xff]
      %v591 = vpack.c.bf16 %v584, %v583
      %v592 = vpack.c.bf16 %v586, %v585
      %v593 = vpack.c.bf16 %v588, %v587
      %v594 = vpack.c.bf16 %v590, %v589
      %v595 = vld [vmem:[%s4 + $0x20] sm:$0xff]
      %v596 = vld [vmem:[%s4 + $0x28] sm:$0xff]
      %v597 = vld [vmem:[%s4 + $0x30] sm:$0xff]
      %v598 = vld [vmem:[%s4 + $0x38] sm:$0xff]
      %v603 = vunpack.c.l.b16 %v595
      %v604 = vunpack.c.h.b16 %v595
      %v605 = vunpack.c.l.b16 %v596
      %v606 = vunpack.c.h.b16 %v596
      %v607 = vunpack.c.l.b16 %v597
      %v608 = vunpack.c.h.b16 %v597
      %v609 = vunpack.c.l.b16 %v598
      %v610 = vunpack.c.h.b16 %v598
      %v611 = vpack.c.b16 %v605, %v603
      %v612 = vpack.c.b16 %v606, %v604
      %v613 = vpack.c.b16 %v609, %v607
      %v614 = vpack.c.b16 %v610, %v608
      %v620 = vsel %vm486, %v591, 0
      %v623 = vsel %vm486, %v592, 0
      %v626 = vsel %vm486, %v593, 0
      %v629 = vsel %vm486, %v594, 0
      %631 = vmatprep.subr.bf16.mxu0 %v612
      %632 = vmatpush1.bf16.msra.mxu0 %v611
      %633 = vmatprep.subr.bf16.mxu0 %v614
      %634 = vmatpush1.bf16.msra.mxu0 %v613
      %635 = vmatprep.subr.bf16.mxu0 0
      %636 = vmatpush1.bf16.msra.mxu0 0
      %637 = vmatprep.subr.bf16.mxu0 0
      %638 = vmatpush1.bf16.msra.mxu0 0
      %639 = vmatprep.subr.bf16.mxu0 0
      %640 = vmatpush1.bf16.msra.mxu0 0
      %641 = vmatprep.subr.bf16.mxu0 0
      %642 = vmatpush1.bf16.msra.mxu0 0
      %643 = vmatprep.subr.bf16.mxu0 0
      %644 = vmatpush1.bf16.msra.mxu0 0
      %645 = vmatprep.subr.bf16.mxu0 0
      %646 = vmatpush1.bf16.msra.mxu0 0
      %647 = vmatprep.subr.bf16.mxu0 0
      %648 = vmatpush1.bf16.msra.mxu0 0
      %649 = vmatprep.subr.bf16.mxu0 0
      %650 = vmatpush1.bf16.msra.mxu0 0
      %651 = vmatprep.subr.bf16.mxu0 0
      %652 = vmatpush1.bf16.msra.mxu0 0
      %653 = vmatprep.subr.bf16.mxu0 0
      %654 = vmatpush1.bf16.msra.mxu0 0
      %655 = vmatprep.subr.bf16.mxu0 0
      %656 = vmatpush1.bf16.msra.mxu0 0
      %657 = vmatprep.subr.bf16.mxu0 0
      %658 = vmatpush1.bf16.msra.mxu0 0
      %659 = vmatprep.subr.bf16.mxu0 0
      %660 = vmatpush1.bf16.msra.mxu0 0
      %661 = vmatprep.subr.bf16.mxu0 0
      %662 = vmatpush1.bf16.msra.mxu0 0
      %663 = vmatprep.mubr.bf16.mxu0 0
      %664 = vmatmul.mubr.bf16.gmra.mrb[0].mxu0 %v620
      %v665 = vpop.f32.mrb[0].mxu0
      %v666 = vadd.f32 0.0, %v665
      %v667 = vpop.f32.mrb[0].mxu0
      %v668 = vadd.f32 0.0, %v667
      %v669 = vpop.f32.mrb[0].mxu0
      %v670 = vadd.f32 0.0, %v669
      %v671 = vpop.f32.mrb[0].mxu0
      %v672 = vadd.f32 0.0, %v671
      %673 = vmatprep.mubr.bf16.mxu0 0
      %674 = vmatmul.mubr.bf16.gmra.mrb[0].mxu0 %v623
      %v675 = vpop.f32.mrb[0].mxu0
      %v676 = vadd.f32 0.0, %v675
      %v677 = vpop.f32.mrb[0].mxu0
      %v678 = vadd.f32 0.0, %v677
      %v679 = vpop.f32.mrb[0].mxu0
      %v680 = vadd.f32 0.0, %v679
      %v681 = vpop.f32.mrb[0].mxu0
      %v682 = vadd.f32 0.0, %v681
      %683 = vmatprep.mubr.bf16.mxu0 0
      %684 = vmatmul.mubr.bf16.gmra.mrb[0].mxu0 %v626
      %v685 = vpop.f32.mrb[0].mxu0
      %v686 = vadd.f32 0.0, %v685
      %v687 = vpop.f32.mrb[0].mxu0
      %v688 = vadd.f32 0.0, %v687
      %v689 = vpop.f32.mrb[0].mxu0
      %v690 = vadd.f32 0.0, %v689
      %v691 = vpop.f32.mrb[0].mxu0
      %v692 = vadd.f32 0.0, %v691
      %693 = vmatprep.mubr.bf16.mxu0 0
      %694 = vmatmul.mubr.bf16.gmra.mrb[0].mxu0 %v629
      %v695 = vpop.f32.mrb[0].mxu0
      %v696 = vadd.f32 0.0, %v695
      %v697 = vpop.f32.mrb[0].mxu0
      %v698 = vadd.f32 0.0, %v697
      %v699 = vpop.f32.mrb[0].mxu0
      %v700 = vadd.f32 0.0, %v699
      %v701 = vpop.f32.mrb[0].mxu0
      %v702 = vadd.f32 0.0, %v701
      %703 = vdwg.mxu0
      %v708 = vunpack.c.l.b16 %v579
      %v709 = vunpack.c.h.b16 %v579
      %v710 = vunpack.c.l.b16 %v580
      %v711 = vunpack.c.h.b16 %v580
      %v712 = vunpack.c.l.b16 %v581
      %v713 = vunpack.c.h.b16 %v581
      %v714 = vunpack.c.l.b16 %v582
      %v715 = vunpack.c.h.b16 %v582
      %v716 = vpack.c.b16 %v710, %v708
      %v717 = vpack.c.b16 %v711, %v709
      %v718 = vpack.c.b16 %v714, %v712
      %v719 = vpack.c.b16 %v715, %v713
      %v725 = vsel %vm486, %v575, 0
      %v728 = vsel %vm486, %v576, 0
      %v731 = vsel %vm486, %v577, 0
      %v734 = vsel %vm486, %v578, 0
      %736 = vmatprep.subr.bf16.mxu0 %v717
      %737 = vmatpush1.bf16.msra.mxu0 %v716
      %738 = vmatprep.subr.bf16.mxu0 %v719
      %739 = vmatpush1.bf16.msra.mxu0 %v718
      %740 = vmatprep.subr.bf16.mxu0 0
      %741 = vmatpush1.bf16.msra.mxu0 0
      %742 = vmatprep.subr.bf16.mxu0 0
      %743 = vmatpush1.bf16.msra.mxu0 0
      %744 = vmatprep.subr.bf16.mxu0 0
      %745 = vmatpush1.bf16.msra.mxu0 0
      %746 = vmatprep.subr.bf16.mxu0 0
      %747 = vmatpush1.bf16.msra.mxu0 0
      %748 = vmatprep.subr.bf16.mxu0 0
      %749 = vmatpush1.bf16.msra.mxu0 0
      %750 = vmatprep.subr.bf16.mxu0 0
      %751 = vmatpush1.bf16.msra.mxu0 0
      %752 = vmatprep.subr.bf16.mxu0 0
      %753 = vmatpush1.bf16.msra.mxu0 0
      %754 = vmatprep.subr.bf16.mxu0 0
      %755 = vmatpush1.bf16.msra.mxu0 0
      %756 = vmatprep.subr.bf16.mxu0 0
      %757 = vmatpush1.bf16.msra.mxu0 0
      %758 = vmatprep.subr.bf16.mxu0 0
      %759 = vmatpush1.bf16.msra.mxu0 0
      %760 = vmatprep.subr.bf16.mxu0 0
      %761 = vmatpush1.bf16.msra.mxu0 0
      %762 = vmatprep.subr.bf16.mxu0 0
      %763 = vmatpush1.bf16.msra.mxu0 0
      %764 = vmatprep.subr.bf16.mxu0 0
      %765 = vmatpush1.bf16.msra.mxu0 0
      %766 = vmatprep.subr.bf16.mxu0 0
      %767 = vmatpush1.bf16.msra.mxu0 0
      %768 = vmatprep.mubr.bf16.mxu0 0
      %769 = vmatmul.mubr.bf16.gmra.mrb[0].mxu0 %v725
      %v770 = vpop.f32.mrb[0].mxu0
      %v771 = vadd.f32 %v666, %v770
      %v772 = vpop.f32.mrb[0].mxu0
      %v773 = vadd.f32 %v668, %v772
      %v774 = vpop.f32.mrb[0].mxu0
      %v775 = vadd.f32 %v670, %v774
      %v776 = vpop.f32.mrb[0].mxu0
      %v777 = vadd.f32 %v672, %v776
      %778 = vmatprep.mubr.bf16.mxu0 0
      %779 = vmatmul.mubr.bf16.gmra.mrb[0].mxu0 %v728
      %v780 = vpop.f32.mrb[0].mxu0
      %v781 = vadd.f32 %v676, %v780
      %v782 = vpop.f32.mrb[0].mxu0
      %v783 = vadd.f32 %v678, %v782
      %v784 = vpop.f32.mrb[0].mxu0
      %v785 = vadd.f32 %v680, %v784
      %v786 = vpop.f32.mrb[0].mxu0
      %v787 = vadd.f32 %v682, %v786
      %788 = vmatprep.mubr.bf16.mxu0 0
      %789 = vmatmul.mubr.bf16.gmra.mrb[0].mxu0 %v731
      %v790 = vpop.f32.mrb[0].mxu0
      %v791 = vadd.f32 %v686, %v790
      %v792 = vpop.f32.mrb[0].mxu0
      %v793 = vadd.f32 %v688, %v792
      %v794 = vpop.f32.mrb[0].mxu0
      %v795 = vadd.f32 %v690, %v794
      %v796 = vpop.f32.mrb[0].mxu0
      %v797 = vadd.f32 %v692, %v796
      %798 = vmatprep.mubr.bf16.mxu0 0
      %799 = vmatmul.mubr.bf16.gmra.mrb[0].mxu0 %v734
      %v800 = vpop.f32.mrb[0].mxu0
      %v801 = vadd.f32 %v696, %v800
      %v802 = vpop.f32.mrb[0].mxu0
      %v803 = vadd.f32 %v698, %v802
      %v804 = vpop.f32.mrb[0].mxu0
      %v805 = vadd.f32 %v700, %v804
      %v806 = vpop.f32.mrb[0].mxu0
      %v807 = vadd.f32 %v702, %v806
      %808 = vdwg.mxu0
      %v809 = vld [vmem:[#allocation2 + $0x9] sm:$0xff]
      %v810 = vld [vmem:[#allocation2 + $0x11] sm:$0xff]
      %v811 = vld [vmem:[#allocation2 + $0x19] sm:$0xff]
      %v812 = vld [vmem:[#allocation2 + $0x21] sm:$0xff]
      %v813 = vld [vmem:[#allocation2 + $0x29] sm:$0xff]
      %v814 = vld [vmem:[#allocation2 + $0x31] sm:$0xff]
      %v815 = vld [vmem:[#allocation2 + $0x39] sm:$0xff]
      %v816 = vld [vmem:[#allocation2 + $0x41] sm:$0xff]
      %817 = vset.pattern.permute.xlu0 1
      %818 = vperm.xlu0 %817, %v519
      %v819 = vpop.permute.xlu0 %818
      %821 = vset.pattern.permute.xlu0 1
      %822 = vperm.xlu0 %821, %v520
      %v823 = vpop.permute.xlu0 %822
      %825 = vset.pattern.permute.xlu0 1
      %826 = vperm.xlu0 %825, %v521
      %v827 = vpop.permute.xlu0 %826
      %829 = vset.pattern.permute.xlu0 1
      %830 = vperm.xlu0 %829, %v522
      %v831 = vpop.permute.xlu0 %830
      %833 = vset.pattern.permute.xlu0 1
      %834 = vperm.xlu0 %833, %v523
      %v835 = vpop.permute.xlu0 %834
      %837 = vset.pattern.permute.xlu0 1
      %838 = vperm.xlu0 %837, %v524
      %v839 = vpop.permute.xlu0 %838
      %841 = vset.pattern.permute.xlu0 1
      %842 = vperm.xlu0 %841, %v525
      %v843 = vpop.permute.xlu0 %842
      %845 = vset.pattern.permute.xlu0 1
      %846 = vperm.xlu0 %845, %v526
      %v847 = vpop.permute.xlu0 %846
      %v849 = vmul.f32 %v809, %v819
      %v850 = vmul.f32 %v810, %v823
      %v851 = vmul.f32 %v811, %v827
      %v852 = vmul.f32 %v812, %v831
      %v853 = vmul.f32 %v813, %v835
      %v854 = vmul.f32 %v814, %v839
      %v855 = vmul.f32 %v815, %v843
      %v856 = vmul.f32 %v816, %v847
      %v857 = vpack.c.bf16 %v850, %v849
      %v858 = vpack.c.bf16 %v852, %v851
      %v859 = vpack.c.bf16 %v854, %v853
      %v860 = vpack.c.bf16 %v856, %v855
      %v861 = vld [vmem:[%s4 + $0x40] sm:$0xff]
      %v862 = vld [vmem:[%s4 + $0x48] sm:$0xff]
      %v863 = vld [vmem:[%s4 + $0x50] sm:$0xff]
      %v864 = vld [vmem:[%s4 + $0x58] sm:$0xff]
      %v869 = vunpack.c.l.b16 %v861
      %v870 = vunpack.c.h.b16 %v861
      %v871 = vunpack.c.l.b16 %v862
      %v872 = vunpack.c.h.b16 %v862
      %v873 = vunpack.c.l.b16 %v863
      %v874 = vunpack.c.h.b16 %v863
      %v875 = vunpack.c.l.b16 %v864
      %v876 = vunpack.c.h.b16 %v864
      %v877 = vpack.c.b16 %v871, %v869
      %v878 = vpack.c.b16 %v872, %v870
      %v879 = vpack.c.b16 %v875, %v873
      %v880 = vpack.c.b16 %v876, %v874
      %v886 = vsel %vm486, %v857, 0
      %v889 = vsel %vm486, %v858, 0
      %v892 = vsel %vm486, %v859, 0
      %v895 = vsel %vm486, %v860, 0
      %897 = vmatprep.subr.bf16.mxu0 %v878
      %898 = vmatpush1.bf16.msra.mxu0 %v877
      %899 = vmatprep.subr.bf16.mxu0 %v880
      %900 = vmatpush1.bf16.msra.mxu0 %v879
      %901 = vmatprep.subr.bf16.mxu0 0
      %902 = vmatpush1.bf16.msra.mxu0 0
      %903 = vmatprep.subr.bf16.mxu0 0
      %904 = vmatpush1.bf16.msra.mxu0 0
      %905 = vmatprep.subr.bf16.mxu0 0
      %906 = vmatpush1.bf16.msra.mxu0 0
      %907 = vmatprep.subr.bf16.mxu0 0
      %908 = vmatpush1.bf16.msra.mxu0 0
      %909 = vmatprep.subr.bf16.mxu0 0
      %910 = vmatpush1.bf16.msra.mxu0 0
      %911 = vmatprep.subr.bf16.mxu0 0
      %912 = vmatpush1.bf16.msra.mxu0 0
      %913 = vmatprep.subr.bf16.mxu0 0
      %914 = vmatpush1.bf16.msra.mxu0 0
      %915 = vmatprep.subr.bf16.mxu0 0
      %916 = vmatpush1.bf16.msra.mxu0 0
      %917 = vmatprep.subr.bf16.mxu0 0
      %918 = vmatpush1.bf16.msra.mxu0 0
      %919 = vmatprep.subr.bf16.mxu0 0
      %920 = vmatpush1.bf16.msra.mxu0 0
      %921 = vmatprep.subr.bf16.mxu0 0
      %922 = vmatpush1.bf16.msra.mxu0 0
      %923 = vmatprep.subr.bf16.mxu0 0
      %924 = vmatpush1.bf16.msra.mxu0 0
      %925 = vmatprep.subr.bf16.mxu0 0
      %926 = vmatpush1.bf16.msra.mxu0 0
      %927 = vmatprep.subr.bf16.mxu0 0
      %928 = vmatpush1.bf16.msra.mxu0 0
      %929 = vmatprep.mubr.bf16.mxu0 0
      %930 = vmatmul.mubr.bf16.gmra.mrb[0].mxu0 %v886
      %v931 = vpop.f32.mrb[0].mxu0
      %v932 = vadd.f32 0.0, %v931
      %v933 = vpop.f32.mrb[0].mxu0
      %v934 = vadd.f32 0.0, %v933
      %v935 = vpop.f32.mrb[0].mxu0
      %v936 = vadd.f32 0.0, %v935
      %v937 = vpop.f32.mrb[0].mxu0
      %v938 = vadd.f32 0.0, %v937
      %939 = vmatprep.mubr.bf16.mxu0 0
      %940 = vmatmul.mubr.bf16.gmra.mrb[0].mxu0 %v889
      %v941 = vpop.f32.mrb[0].mxu0
      %v942 = vadd.f32 0.0, %v941
      %v943 = vpop.f32.mrb[0].mxu0
      %v944 = vadd.f32 0.0, %v943
      %v945 = vpop.f32.mrb[0].mxu0
      %v946 = vadd.f32 0.0, %v945
      %v947 = vpop.f32.mrb[0].mxu0
      %v948 = vadd.f32 0.0, %v947
      %949 = vmatprep.mubr.bf16.mxu0 0
      %950 = vmatmul.mubr.bf16.gmra.mrb[0].mxu0 %v892
      %v951 = vpop.f32.mrb[0].mxu0
      %v952 = vadd.f32 0.0, %v951
      %v953 = vpop.f32.mrb[0].mxu0
      %v954 = vadd.f32 0.0, %v953
      %v955 = vpop.f32.mrb[0].mxu0
      %v956 = vadd.f32 0.0, %v955
      %v957 = vpop.f32.mrb[0].mxu0
      %v958 = vadd.f32 0.0, %v957
      %959 = vmatprep.mubr.bf16.mxu0 0
      %960 = vmatmul.mubr.bf16.gmra.mrb[0].mxu0 %v895
      %v961 = vpop.f32.mrb[0].mxu0
      %v962 = vadd.f32 0.0, %v961
      %v963 = vpop.f32.mrb[0].mxu0
      %v964 = vadd.f32 0.0, %v963
      %v965 = vpop.f32.mrb[0].mxu0
      %v966 = vadd.f32 0.0, %v965
      %v967 = vpop.f32.mrb[0].mxu0
      %v968 = vadd.f32 0.0, %v967
      %969 = vdwg.mxu0
      %v970 = vadd.f32 %v771, %v932
      %v971 = vadd.f32 %v773, %v934
      %v972 = vadd.f32 %v775, %v936
      %v973 = vadd.f32 %v777, %v938
      %v974 = vadd.f32 %v781, %v942
      %v975 = vadd.f32 %v783, %v944
      %v976 = vadd.f32 %v785, %v946
      %v977 = vadd.f32 %v787, %v948
      %v978 = vadd.f32 %v791, %v952
      %v979 = vadd.f32 %v793, %v954
      %v980 = vadd.f32 %v795, %v956
      %v981 = vadd.f32 %v797, %v958
      %v982 = vadd.f32 %v801, %v962
      %v983 = vadd.f32 %v803, %v964
      %v984 = vadd.f32 %v805, %v966
      %v985 = vadd.f32 %v807, %v968
      %v986 = vld [vmem:[#allocation2 + $0xf] sm:$0xff]
      %v987 = vld [vmem:[#allocation2 + $0x17] sm:$0xff]
      %v988 = vld [vmem:[#allocation2 + $0x1f] sm:$0xff]
      %v989 = vld [vmem:[#allocation2 + $0x27] sm:$0xff]
      %v990 = vld [vmem:[#allocation2 + $0x2f] sm:$0xff]
      %v991 = vld [vmem:[#allocation2 + $0x37] sm:$0xff]
      %v992 = vld [vmem:[#allocation2 + $0x3f] sm:$0xff]
      %v993 = vld [vmem:[#allocation2 + $0x47] sm:$0xff]
      %v994 = vmul.f32 %v986, %v530
      %v995 = vmul.f32 %v987, %v535
      %v996 = vmul.f32 %v988, %v540
      %v997 = vmul.f32 %v989, %v545
      %v998 = vmul.f32 %v990, %v550
      %v999 = vmul.f32 %v991, %v555
      %v1000 = vmul.f32 %v992, %v560
      %v1001 = vmul.f32 %v993, %v565
      %v1002 = vpack.c.bf16 %v995, %v994
      %v1003 = vpack.c.bf16 %v997, %v996
      %v1004 = vpack.c.bf16 %v999, %v998
      %v1005 = vpack.c.bf16 %v1001, %v1000
      %v1006 = vld [vmem:[%s4 + $0x60] sm:$0xff]
      %v1007 = vld [vmem:[%s4 + $0x68] sm:$0xff]
      %v1008 = vld [vmem:[%s4 + $0x70] sm:$0xff]
      %v1009 = vld [vmem:[%s4 + $0x78] sm:$0xff]
      %v1014 = vunpack.c.l.b16 %v1006
      %v1015 = vunpack.c.h.b16 %v1006
      %v1016 = vunpack.c.l.b16 %v1007
      %v1017 = vunpack.c.h.b16 %v1007
      %v1018 = vunpack.c.l.b16 %v1008
      %v1019 = vunpack.c.h.b16 %v1008
      %v1020 = vunpack.c.l.b16 %v1009
      %v1021 = vunpack.c.h.b16 %v1009
      %v1022 = vpack.c.b16 %v1016, %v1014
      %v1023 = vpack.c.b16 %v1017, %v1015
      %v1024 = vpack.c.b16 %v1020, %v1018
      %v1025 = vpack.c.b16 %v1021, %v1019
      %v1031 = vsel %vm486, %v1002, 0
      %v1034 = vsel %vm486, %v1003, 0
      %v1037 = vsel %vm486, %v1004, 0
      %v1040 = vsel %vm486, %v1005, 0
      %1042 = vmatprep.subr.bf16.mxu0 %v1023
      %1043 = vmatpush1.bf16.msra.mxu0 %v1022
      %1044 = vmatprep.subr.bf16.mxu0 %v1025
      %1045 = vmatpush1.bf16.msra.mxu0 %v1024
      %1046 = vmatprep.subr.bf16.mxu0 0
      %1047 = vmatpush1.bf16.msra.mxu0 0
      %1048 = vmatprep.subr.bf16.mxu0 0
      %1049 = vmatpush1.bf16.msra.mxu0 0
      %1050 = vmatprep.subr.bf16.mxu0 0
      %1051 = vmatpush1.bf16.msra.mxu0 0
      %1052 = vmatprep.subr.bf16.mxu0 0
      %1053 = vmatpush1.bf16.msra.mxu0 0
      %1054 = vmatprep.subr.bf16.mxu0 0
      %1055 = vmatpush1.bf16.msra.mxu0 0
      %1056 = vmatprep.subr.bf16.mxu0 0
      %1057 = vmatpush1.bf16.msra.mxu0 0
      %1058 = vmatprep.subr.bf16.mxu0 0
      %1059 = vmatpush1.bf16.msra.mxu0 0
      %1060 = vmatprep.subr.bf16.mxu0 0
      %1061 = vmatpush1.bf16.msra.mxu0 0
      %1062 = vmatprep.subr.bf16.mxu0 0
      %1063 = vmatpush1.bf16.msra.mxu0 0
      %1064 = vmatprep.subr.bf16.mxu0 0
      %1065 = vmatpush1.bf16.msra.mxu0 0
      %1066 = vmatprep.subr.bf16.mxu0 0
      %1067 = vmatpush1.bf16.msra.mxu0 0
      %1068 = vmatprep.subr.bf16.mxu0 0
      %1069 = vmatpush1.bf16.msra.mxu0 0
      %1070 = vmatprep.subr.bf16.mxu0 0
      %1071 = vmatpush1.bf16.msra.mxu0 0
      %1072 = vmatprep.subr.bf16.mxu0 0
      %1073 = vmatpush1.bf16.msra.mxu0 0
      %1074 = vmatprep.mubr.bf16.mxu0 0
      %1075 = vmatmul.mubr.bf16.gmra.mrb[0].mxu0 %v1031
      %v1076 = vpop.f32.mrb[0].mxu0
      %v1077 = vadd.f32 0.0, %v1076
      %v1078 = vpop.f32.mrb[0].mxu0
      %v1079 = vadd.f32 0.0, %v1078
      %v1080 = vpop.f32.mrb[0].mxu0
      %v1081 = vadd.f32 0.0, %v1080
      %v1082 = vpop.f32.mrb[0].mxu0
      %v1083 = vadd.f32 0.0, %v1082
      %1084 = vmatprep.mubr.bf16.mxu0 0
      %1085 = vmatmul.mubr.bf16.gmra.mrb[0].mxu0 %v1034
      %v1086 = vpop.f32.mrb[0].mxu0
      %v1087 = vadd.f32 0.0, %v1086
      %v1088 = vpop.f32.mrb[0].mxu0
      %v1089 = vadd.f32 0.0, %v1088
      %v1090 = vpop.f32.mrb[0].mxu0
      %v1091 = vadd.f32 0.0, %v1090
      %v1092 = vpop.f32.mrb[0].mxu0
      %v1093 = vadd.f32 0.0, %v1092
      %1094 = vmatprep.mubr.bf16.mxu0 0
      %1095 = vmatmul.mubr.bf16.gmra.mrb[0].mxu0 %v1037
      %v1096 = vpop.f32.mrb[0].mxu0
      %v1097 = vadd.f32 0.0, %v1096
      %v1098 = vpop.f32.mrb[0].mxu0
      %v1099 = vadd.f32 0.0, %v1098
      %v1100 = vpop.f32.mrb[0].mxu0
      %v1101 = vadd.f32 0.0, %v1100
      %v1102 = vpop.f32.mrb[0].mxu0
      %v1103 = vadd.f32 0.0, %v1102
      %1104 = vmatprep.mubr.bf16.mxu0 0
      %1105 = vmatmul.mubr.bf16.gmra.mrb[0].mxu0 %v1040
      %v1106 = vpop.f32.mrb[0].mxu0
      %v1107 = vadd.f32 0.0, %v1106
      %v1108 = vpop.f32.mrb[0].mxu0
      %v1109 = vadd.f32 0.0, %v1108
      %v1110 = vpop.f32.mrb[0].mxu0
      %v1111 = vadd.f32 0.0, %v1110
      %v1112 = vpop.f32.mrb[0].mxu0
      %v1113 = vadd.f32 0.0, %v1112
      %1114 = vdwg.mxu0
      %v1115 = vadd.f32 %v970, %v1077
      %v1116 = vadd.f32 %v971, %v1079
      %v1117 = vadd.f32 %v972, %v1081
      %v1118 = vadd.f32 %v973, %v1083
      %v1119 = vadd.f32 %v974, %v1087
      %v1120 = vadd.f32 %v975, %v1089
      %v1121 = vadd.f32 %v976, %v1091
      %v1122 = vadd.f32 %v977, %v1093
      %v1123 = vadd.f32 %v978, %v1097
      %v1124 = vadd.f32 %v979, %v1099
      %v1125 = vadd.f32 %v980, %v1101
      %v1126 = vadd.f32 %v981, %v1103
      %v1127 = vadd.f32 %v982, %v1107
      %v1128 = vadd.f32 %v983, %v1109
      %v1129 = vadd.f32 %v984, %v1111
      %v1130 = vadd.f32 %v985, %v1113
      %v1131 = vld [vmem:[%s4 + $0x80] sm:$0xff]
      %v1132 = vld [vmem:[%s4 + $0x88] sm:$0xff]
      %v1133 = vld [vmem:[%s4 + $0x90] sm:$0xff]
      %v1134 = vld [vmem:[%s4 + $0x98] sm:$0xff]
      %v1139 = vunpack.c.l.b16 %v1131
      %v1140 = vunpack.c.h.b16 %v1131
      %v1141 = vunpack.c.l.b16 %v1132
      %v1142 = vunpack.c.h.b16 %v1132
      %v1143 = vunpack.c.l.b16 %v1133
      %v1144 = vunpack.c.h.b16 %v1133
      %v1145 = vunpack.c.l.b16 %v1134
      %v1146 = vunpack.c.h.b16 %v1134
      %v1147 = vpack.c.b16 %v1141, %v1139
      %v1148 = vpack.c.b16 %v1142, %v1140
      %v1149 = vpack.c.b16 %v1145, %v1143
      %v1150 = vpack.c.b16 %v1146, %v1144
      %v1156 = vsel %vm486, %v507, 0
      %v1159 = vsel %vm486, %v508, 0
      %v1162 = vsel %vm486, %v509, 0
      %v1165 = vsel %vm486, %v510, 0
      %1167 = vmatprep.subr.bf16.mxu0 %v1148
      %1168 = vmatpush1.bf16.msra.mxu0 %v1147
      %1169 = vmatprep.subr.bf16.mxu0 %v1150
      %1170 = vmatpush1.bf16.msra.mxu0 %v1149
      %1171 = vmatprep.subr.bf16.mxu0 0
      %1172 = vmatpush1.bf16.msra.mxu0 0
      %1173 = vmatprep.subr.bf16.mxu0 0
      %1174 = vmatpush1.bf16.msra.mxu0 0
      %1175 = vmatprep.subr.bf16.mxu0 0
      %1176 = vmatpush1.bf16.msra.mxu0 0
      %1177 = vmatprep.subr.bf16.mxu0 0
      %1178 = vmatpush1.bf16.msra.mxu0 0
      %1179 = vmatprep.subr.bf16.mxu0 0
      %1180 = vmatpush1.bf16.msra.mxu0 0
      %1181 = vmatprep.subr.bf16.mxu0 0
      %1182 = vmatpush1.bf16.msra.mxu0 0
      %1183 = vmatprep.subr.bf16.mxu0 0
      %1184 = vmatpush1.bf16.msra.mxu0 0
      %1185 = vmatprep.subr.bf16.mxu0 0
      %1186 = vmatpush1.bf16.msra.mxu0 0
      %1187 = vmatprep.subr.bf16.mxu0 0
      %1188 = vmatpush1.bf16.msra.mxu0 0
      %1189 = vmatprep.subr.bf16.mxu0 0
      %1190 = vmatpush1.bf16.msra.mxu0 0
      %1191 = vmatprep.subr.bf16.mxu0 0
      %1192 = vmatpush1.bf16.msra.mxu0 0
      %1193 = vmatprep.subr.bf16.mxu0 0
      %1194 = vmatpush1.bf16.msra.mxu0 0
      %1195 = vmatprep.subr.bf16.mxu0 0
      %1196 = vmatpush1.bf16.msra.mxu0 0
      %1197 = vmatprep.subr.bf16.mxu0 0
      %1198 = vmatpush1.bf16.msra.mxu0 0
      %1199 = vmatprep.mubr.bf16.mxu0 0
      %1200 = vmatmul.mubr.bf16.gmra.mrb[0].mxu0 %v1156
      %v1201 = vpop.f32.mrb[0].mxu0
      %v1202 = vadd.f32 0.0, %v1201
      %v1203 = vpop.f32.mrb[0].mxu0
      %v1204 = vadd.f32 0.0, %v1203
      %v1205 = vpop.f32.mrb[0].mxu0
      %v1206 = vadd.f32 0.0, %v1205
      %v1207 = vpop.f32.mrb[0].mxu0
      %v1208 = vadd.f32 0.0, %v1207
      %1209 = vmatprep.mubr.bf16.mxu0 0
      %1210 = vmatmul.mubr.bf16.gmra.mrb[0].mxu0 %v1159
      %v1211 = vpop.f32.mrb[0].mxu0
      %v1212 = vadd.f32 0.0, %v1211
      %v1213 = vpop.f32.mrb[0].mxu0
      %v1214 = vadd.f32 0.0, %v1213
      %v1215 = vpop.f32.mrb[0].mxu0
      %v1216 = vadd.f32 0.0, %v1215
      %v1217 = vpop.f32.mrb[0].mxu0
      %v1218 = vadd.f32 0.0, %v1217
      %1219 = vmatprep.mubr.bf16.mxu0 0
      %1220 = vmatmul.mubr.bf16.gmra.mrb[0].mxu0 %v1162
      %v1221 = vpop.f32.mrb[0].mxu0
      %v1222 = vadd.f32 0.0, %v1221
      %v1223 = vpop.f32.mrb[0].mxu0
      %v1224 = vadd.f32 0.0, %v1223
      %v1225 = vpop.f32.mrb[0].mxu0
      %v1226 = vadd.f32 0.0, %v1225
      %v1227 = vpop.f32.mrb[0].mxu0
      %v1228 = vadd.f32 0.0, %v1227
      %1229 = vmatprep.mubr.bf16.mxu0 0
      %1230 = vmatmul.mubr.bf16.gmra.mrb[0].mxu0 %v1165
      %v1231 = vpop.f32.mrb[0].mxu0
      %v1232 = vadd.f32 0.0, %v1231
      %v1233 = vpop.f32.mrb[0].mxu0
      %v1234 = vadd.f32 0.0, %v1233
      %v1235 = vpop.f32.mrb[0].mxu0
      %v1236 = vadd.f32 0.0, %v1235
      %v1237 = vpop.f32.mrb[0].mxu0
      %v1238 = vadd.f32 0.0, %v1237
      %1239 = vdwg.mxu0
      %v1240 = vadd.f32 %v1115, %v1202
      %v1241 = vadd.f32 %v1116, %v1204
      %v1242 = vadd.f32 %v1117, %v1206
      %v1243 = vadd.f32 %v1118, %v1208
      %v1244 = vadd.f32 %v1119, %v1212
      %v1245 = vadd.f32 %v1120, %v1214
      %v1246 = vadd.f32 %v1121, %v1216
      %v1247 = vadd.f32 %v1122, %v1218
      %v1248 = vadd.f32 %v1123, %v1222
      %v1249 = vadd.f32 %v1124, %v1224
      %v1250 = vadd.f32 %v1125, %v1226
      %v1251 = vadd.f32 %v1126, %v1228
      %v1252 = vadd.f32 %v1127, %v1232
      %v1253 = vadd.f32 %v1128, %v1234
      %v1254 = vadd.f32 %v1129, %v1236
      %v1255 = vadd.f32 %v1130, %v1238
      %v1256 = vld [vmem:[#allocation2 + $0x11] sm:$0xff]
      %v1257 = vld [vmem:[#allocation2 + $0x19] sm:$0xff]
      %v1258 = vld [vmem:[#allocation2 + $0x21] sm:$0xff]
      %v1259 = vld [vmem:[#allocation2 + $0x29] sm:$0xff]
      %v1260 = vld [vmem:[#allocation2 + $0x31] sm:$0xff]
      %v1261 = vld [vmem:[#allocation2 + $0x39] sm:$0xff]
      %v1262 = vld [vmem:[#allocation2 + $0x41] sm:$0xff]
      %v1263 = vld [vmem:[#allocation2 + $0x49] sm:$0xff]
      %v1264 = vmul.f32 %v1256, %v819
      %v1265 = vmul.f32 %v1257, %v823
      %v1266 = vmul.f32 %v1258, %v827
      %v1267 = vmul.f32 %v1259, %v831
      %v1268 = vmul.f32 %v1260, %v835
      %v1269 = vmul.f32 %v1261, %v839
      %v1270 = vmul.f32 %v1262, %v843
      %v1271 = vmul.f32 %v1263, %v847
      %v1272 = vpack.c.bf16 %v1265, %v1264
      %v1273 = vpack.c.bf16 %v1267, %v1266
      %v1274 = vpack.c.bf16 %v1269, %v1268
      %v1275 = vpack.c.bf16 %v1271, %v1270
      %v1276 = vld [vmem:[%s4 + $0xa0] sm:$0xff]
      %v1277 = vld [vmem:[%s4 + $0xa8] sm:$0xff]
      %v1278 = vld [vmem:[%s4 + $0xb0] sm:$0xff]
      %v1279 = vld [vmem:[%s4 + $0xb8] sm:$0xff]
      %v1284 = vunpack.c.l.b16 %v1276
      %v1285 = vunpack.c.h.b16 %v1276
      %v1286 = vunpack.c.l.b16 %v1277
      %v1287 = vunpack.c.h.b16 %v1277
      %v1288 = vunpack.c.l.b16 %v1278
      %v1289 = vunpack.c.h.b16 %v1278
      %v1290 = vunpack.c.l.b16 %v1279
      %v1291 = vunpack.c.h.b16 %v1279
      %v1292 = vpack.c.b16 %v1286, %v1284
      %v1293 = vpack.c.b16 %v1287, %v1285
      %v1294 = vpack.c.b16 %v1290, %v1288
      %v1295 = vpack.c.b16 %v1291, %v1289
      %v1301 = vsel %vm486, %v1272, 0
      %v1304 = vsel %vm486, %v1273, 0
      %v1307 = vsel %vm486, %v1274, 0
      %v1310 = vsel %vm486, %v1275, 0
      %1312 = vmatprep.subr.bf16.mxu0 %v1293
      %1313 = vmatpush1.bf16.msra.mxu0 %v1292
      %1314 = vmatprep.subr.bf16.mxu0 %v1295
      %1315 = vmatpush1.bf16.msra.mxu0 %v1294
      %1316 = vmatprep.subr.bf16.mxu0 0
      %1317 = vmatpush1.bf16.msra.mxu0 0
      %1318 = vmatprep.subr.bf16.mxu0 0
      %1319 = vmatpush1.bf16.msra.mxu0 0
      %1320 = vmatprep.subr.bf16.mxu0 0
      %1321 = vmatpush1.bf16.msra.mxu0 0
      %1322 = vmatprep.subr.bf16.mxu0 0
      %1323 = vmatpush1.bf16.msra.mxu0 0
      %1324 = vmatprep.subr.bf16.mxu0 0
      %1325 = vmatpush1.bf16.msra.mxu0 0
      %1326 = vmatprep.subr.bf16.mxu0 0
      %1327 = vmatpush1.bf16.msra.mxu0 0
      %1328 = vmatprep.subr.bf16.mxu0 0
      %1329 = vmatpush1.bf16.msra.mxu0 0
      %1330 = vmatprep.subr.bf16.mxu0 0
      %1331 = vmatpush1.bf16.msra.mxu0 0
      %1332 = vmatprep.subr.bf16.mxu0 0
      %1333 = vmatpush1.bf16.msra.mxu0 0
      %1334 = vmatprep.subr.bf16.mxu0 0
      %1335 = vmatpush1.bf16.msra.mxu0 0
      %1336 = vmatprep.subr.bf16.mxu0 0
      %1337 = vmatpush1.bf16.msra.mxu0 0
      %1338 = vmatprep.subr.bf16.mxu0 0
      %1339 = vmatpush1.bf16.msra.mxu0 0
      %1340 = vmatprep.subr.bf16.mxu0 0
      %1341 = vmatpush1.bf16.msra.mxu0 0
      %1342 = vmatprep.subr.bf16.mxu0 0
      %1343 = vmatpush1.bf16.msra.mxu0 0
      %1344 = vmatprep.mubr.bf16.mxu0 0
      %1345 = vmatmul.mubr.bf16.gmra.mrb[0].mxu0 %v1301
      %v1346 = vpop.f32.mrb[0].mxu0
      %v1347 = vadd.f32 0.0, %v1346
      %v1348 = vpop.f32.mrb[0].mxu0
      %v1349 = vadd.f32 0.0, %v1348
      %v1350 = vpop.f32.mrb[0].mxu0
      %v1351 = vadd.f32 0.0, %v1350
      %v1352 = vpop.f32.mrb[0].mxu0
      %v1353 = vadd.f32 0.0, %v1352
      %1354 = vmatprep.mubr.bf16.mxu0 0
      %1355 = vmatmul.mubr.bf16.gmra.mrb[0].mxu0 %v1304
      %v1356 = vpop.f32.mrb[0].mxu0
      %v1357 = vadd.f32 0.0, %v1356
      %v1358 = vpop.f32.mrb[0].mxu0
      %v1359 = vadd.f32 0.0, %v1358
      %v1360 = vpop.f32.mrb[0].mxu0
      %v1361 = vadd.f32 0.0, %v1360
      %v1362 = vpop.f32.mrb[0].mxu0
      %v1363 = vadd.f32 0.0, %v1362
      %1364 = vmatprep.mubr.bf16.mxu0 0
      %1365 = vmatmul.mubr.bf16.gmra.mrb[0].mxu0 %v1307
      %v1366 = vpop.f32.mrb[0].mxu0
      %v1367 = vadd.f32 0.0, %v1366
      %v1368 = vpop.f32.mrb[0].mxu0
      %v1369 = vadd.f32 0.0, %v1368
      %v1370 = vpop.f32.mrb[0].mxu0
      %v1371 = vadd.f32 0.0, %v1370
      %v1372 = vpop.f32.mrb[0].mxu0
      %v1373 = vadd.f32 0.0, %v1372
      %1374 = vmatprep.mubr.bf16.mxu0 0
      %1375 = vmatmul.mubr.bf16.gmra.mrb[0].mxu0 %v1310
      %v1376 = vpop.f32.mrb[0].mxu0
      %v1377 = vadd.f32 0.0, %v1376
      %v1378 = vpop.f32.mrb[0].mxu0
      %v1379 = vadd.f32 0.0, %v1378
      %v1380 = vpop.f32.mrb[0].mxu0
      %v1381 = vadd.f32 0.0, %v1380
      %v1382 = vpop.f32.mrb[0].mxu0
      %v1383 = vadd.f32 0.0, %v1382
      %1384 = vdwg.mxu0
      %v1385 = vadd.f32 %v1240, %v1347
      %v1386 = vadd.f32 %v1241, %v1349
      %v1387 = vadd.f32 %v1242, %v1351
      %v1388 = vadd.f32 %v1243, %v1353
      %v1389 = vadd.f32 %v1244, %v1357
      %v1390 = vadd.f32 %v1245, %v1359
      %v1391 = vadd.f32 %v1246, %v1361
      %v1392 = vadd.f32 %v1247, %v1363
      %v1393 = vadd.f32 %v1248, %v1367
      %v1394 = vadd.f32 %v1249, %v1369
      %v1395 = vadd.f32 %v1250, %v1371
      %v1396 = vadd.f32 %v1251, %v1373
      %v1397 = vadd.f32 %v1252, %v1377
      %v1398 = vadd.f32 %v1253, %v1379
      %v1399 = vadd.f32 %v1254, %v1381
      %v1400 = vadd.f32 %v1255, %v1383
      %v1401 = vld [vmem:[#allocation2 + $0x17] sm:$0xff]
      %v1402 = vld [vmem:[#allocation2 + $0x1f] sm:$0xff]
      %v1403 = vld [vmem:[#allocation2 + $0x27] sm:$0xff]
      %v1404 = vld [vmem:[#allocation2 + $0x2f] sm:$0xff]
      %v1405 = vld [vmem:[#allocation2 + $0x37] sm:$0xff]
      %v1406 = vld [vmem:[#allocation2 + $0x3f] sm:$0xff]
      %v1407 = vld [vmem:[#allocation2 + $0x47] sm:$0xff]
      %v1408 = vld [vmem:[#allocation2 + $0x4f] sm:$0xff]
      %v1409 = vmul.f32 %v1401, %v530
      %v1410 = vmul.f32 %v1402, %v535
      %v1411 = vmul.f32 %v1403, %v540
      %v1412 = vmul.f32 %v1404, %v545
      %v1413 = vmul.f32 %v1405, %v550
      %v1414 = vmul.f32 %v1406, %v555
      %v1415 = vmul.f32 %v1407, %v560
      %v1416 = vmul.f32 %v1408, %v565
      %v1417 = vpack.c.bf16 %v1410, %v1409
      %v1418 = vpack.c.bf16 %v1412, %v1411
      %v1419 = vpack.c.bf16 %v1414, %v1413
      %v1420 = vpack.c.bf16 %v1416, %v1415
      %v1421 = vld [vmem:[%s4 + $0xc0] sm:$0xff]
      %v1422 = vld [vmem:[%s4 + $0xc8] sm:$0xff]
      %v1423 = vld [vmem:[%s4 + $0xd0] sm:$0xff]
      %v1424 = vld [vmem:[%s4 + $0xd8] sm:$0xff]
      %v1429 = vunpack.c.l.b16 %v1421
      %v1430 = vunpack.c.h.b16 %v1421
      %v1431 = vunpack.c.l.b16 %v1422
      %v1432 = vunpack.c.h.b16 %v1422
      %v1433 = vunpack.c.l.b16 %v1423
      %v1434 = vunpack.c.h.b16 %v1423
      %v1435 = vunpack.c.l.b16 %v1424
      %v1436 = vunpack.c.h.b16 %v1424
      %v1437 = vpack.c.b16 %v1431, %v1429
      %v1438 = vpack.c.b16 %v1432, %v1430
      %v1439 = vpack.c.b16 %v1435, %v1433
      %v1440 = vpack.c.b16 %v1436, %v1434
      %v1446 = vsel %vm486, %v1417, 0
      %v1449 = vsel %vm486, %v1418, 0
      %v1452 = vsel %vm486, %v1419, 0
      %v1455 = vsel %vm486, %v1420, 0
      %1457 = vmatprep.subr.bf16.mxu0 %v1438
      %1458 = vmatpush1.bf16.msra.mxu0 %v1437
      %1459 = vmatprep.subr.bf16.mxu0 %v1440
      %1460 = vmatpush1.bf16.msra.mxu0 %v1439
      %1461 = vmatprep.subr.bf16.mxu0 0
      %1462 = vmatpush1.bf16.msra.mxu0 0
      %1463 = vmatprep.subr.bf16.mxu0 0
      %1464 = vmatpush1.bf16.msra.mxu0 0
      %1465 = vmatprep.subr.bf16.mxu0 0
      %1466 = vmatpush1.bf16.msra.mxu0 0
      %1467 = vmatprep.subr.bf16.mxu0 0
      %1468 = vmatpush1.bf16.msra.mxu0 0
      %1469 = vmatprep.subr.bf16.mxu0 0
      %1470 = vmatpush1.bf16.msra.mxu0 0
      %1471 = vmatprep.subr.bf16.mxu0 0
      %1472 = vmatpush1.bf16.msra.mxu0 0
      %1473 = vmatprep.subr.bf16.mxu0 0
      %1474 = vmatpush1.bf16.msra.mxu0 0
      %1475 = vmatprep.subr.bf16.mxu0 0
      %1476 = vmatpush1.bf16.msra.mxu0 0
      %1477 = vmatprep.subr.bf16.mxu0 0
      %1478 = vmatpush1.bf16.msra.mxu0 0
      %1479 = vmatprep.subr.bf16.mxu0 0
      %1480 = vmatpush1.bf16.msra.mxu0 0
      %1481 = vmatprep.subr.bf16.mxu0 0
      %1482 = vmatpush1.bf16.msra.mxu0 0
      %1483 = vmatprep.subr.bf16.mxu0 0
      %1484 = vmatpush1.bf16.msra.mxu0 0
      %1485 = vmatprep.subr.bf16.mxu0 0
      %1486 = vmatpush1.bf16.msra.mxu0 0
      %1487 = vmatprep.subr.bf16.mxu0 0
      %1488 = vmatpush1.bf16.msra.mxu0 0
      %1489 = vmatprep.mubr.bf16.mxu0 0
      %1490 = vmatmul.mubr.bf16.gmra.mrb[0].mxu0 %v1446
      %v1491 = vpop.f32.mrb[0].mxu0
      %v1492 = vadd.f32 0.0, %v1491
      %v1493 = vpop.f32.mrb[0].mxu0
      %v1494 = vadd.f32 0.0, %v1493
      %v1495 = vpop.f32.mrb[0].mxu0
      %v1496 = vadd.f32 0.0, %v1495
      %v1497 = vpop.f32.mrb[0].mxu0
      %v1498 = vadd.f32 0.0, %v1497
      %1499 = vmatprep.mubr.bf16.mxu0 0
      %1500 = vmatmul.mubr.bf16.gmra.mrb[0].mxu0 %v1449
      %v1501 = vpop.f32.mrb[0].mxu0
      %v1502 = vadd.f32 0.0, %v1501
      %v1503 = vpop.f32.mrb[0].mxu0
      %v1504 = vadd.f32 0.0, %v1503
      %v1505 = vpop.f32.mrb[0].mxu0
      %v1506 = vadd.f32 0.0, %v1505
      %v1507 = vpop.f32.mrb[0].mxu0
      %v1508 = vadd.f32 0.0, %v1507
      %1509 = vmatprep.mubr.bf16.mxu0 0
      %1510 = vmatmul.mubr.bf16.gmra.mrb[0].mxu0 %v1452
      %v1511 = vpop.f32.mrb[0].mxu0
      %v1512 = vadd.f32 0.0, %v1511
      %v1513 = vpop.f32.mrb[0].mxu0
      %v1514 = vadd.f32 0.0, %v1513
      %v1515 = vpop.f32.mrb[0].mxu0
      %v1516 = vadd.f32 0.0, %v1515
      %v1517 = vpop.f32.mrb[0].mxu0
      %v1518 = vadd.f32 0.0, %v1517
      %1519 = vmatprep.mubr.bf16.mxu0 0
      %1520 = vmatmul.mubr.bf16.gmra.mrb[0].mxu0 %v1455
      %v1521 = vpop.f32.mrb[0].mxu0
      %v1522 = vadd.f32 0.0, %v1521
      %v1523 = vpop.f32.mrb[0].mxu0
      %v1524 = vadd.f32 0.0, %v1523
      %v1525 = vpop.f32.mrb[0].mxu0
      %v1526 = vadd.f32 0.0, %v1525
      %v1527 = vpop.f32.mrb[0].mxu0
      %v1528 = vadd.f32 0.0, %v1527
      %1529 = vdwg.mxu0
      %v1530 = vadd.f32 %v1385, %v1492
      %v1531 = vadd.f32 %v1386, %v1494
      %v1532 = vadd.f32 %v1387, %v1496
      %v1533 = vadd.f32 %v1388, %v1498
      %v1534 = vadd.f32 %v1389, %v1502
      %v1535 = vadd.f32 %v1390, %v1504
      %v1536 = vadd.f32 %v1391, %v1506
      %v1537 = vadd.f32 %v1392, %v1508
      %v1538 = vadd.f32 %v1393, %v1512
      %v1539 = vadd.f32 %v1394, %v1514
      %v1540 = vadd.f32 %v1395, %v1516
      %v1541 = vadd.f32 %v1396, %v1518
      %v1542 = vadd.f32 %v1397, %v1522
      %v1543 = vadd.f32 %v1398, %v1524
      %v1544 = vadd.f32 %v1399, %v1526
      %v1545 = vadd.f32 %v1400, %v1528
      %v1546 = vld [vmem:[#allocation2 + $0x18] sm:$0xff]
      %v1547 = vld [vmem:[#allocation2 + $0x20] sm:$0xff]
      %v1548 = vld [vmem:[#allocation2 + $0x28] sm:$0xff]
      %v1549 = vld [vmem:[#allocation2 + $0x30] sm:$0xff]
      %v1550 = vld [vmem:[#allocation2 + $0x38] sm:$0xff]
      %v1551 = vld [vmem:[#allocation2 + $0x40] sm:$0xff]
      %v1552 = vld [vmem:[#allocation2 + $0x48] sm:$0xff]
      %v1553 = vld [vmem:[#allocation2 + $0x50] sm:$0xff]
      %v1554 = vpack.c.bf16 %v1547, %v1546
      %v1555 = vpack.c.bf16 %v1549, %v1548
      %v1556 = vpack.c.bf16 %v1551, %v1550
      %v1557 = vpack.c.bf16 %v1553, %v1552
      %v1558 = vld [vmem:[%s4 + $0xe0] sm:$0xff]
      %v1559 = vld [vmem:[%s4 + $0xe8] sm:$0xff]
      %v1560 = vld [vmem:[%s4 + $0xf0] sm:$0xff]
      %v1561 = vld [vmem:[%s4 + $0xf8] sm:$0xff]
      %v1566 = vunpack.c.l.b16 %v1558
      %v1567 = vunpack.c.h.b16 %v1558
      %v1568 = vunpack.c.l.b16 %v1559
      %v1569 = vunpack.c.h.b16 %v1559
      %v1570 = vunpack.c.l.b16 %v1560
      %v1571 = vunpack.c.h.b16 %v1560
      %v1572 = vunpack.c.l.b16 %v1561
      %v1573 = vunpack.c.h.b16 %v1561
      %v1574 = vpack.c.b16 %v1568, %v1566
      %v1575 = vpack.c.b16 %v1569, %v1567
      %v1576 = vpack.c.b16 %v1572, %v1570
      %v1577 = vpack.c.b16 %v1573, %v1571
      %v1583 = vsel %vm486, %v1554, 0
      %v1586 = vsel %vm486, %v1555, 0
      %v1589 = vsel %vm486, %v1556, 0
      %v1592 = vsel %vm486, %v1557, 0
      %1594 = vmatprep.subr.bf16.mxu0 %v1575
      %1595 = vmatpush1.bf16.msra.mxu0 %v1574
      %1596 = vmatprep.subr.bf16.mxu0 %v1577
      %1597 = vmatpush1.bf16.msra.mxu0 %v1576
      %1598 = vmatprep.subr.bf16.mxu0 0
      %1599 = vmatpush1.bf16.msra.mxu0 0
      %1600 = vmatprep.subr.bf16.mxu0 0
      %1601 = vmatpush1.bf16.msra.mxu0 0
      %1602 = vmatprep.subr.bf16.mxu0 0
      %1603 = vmatpush1.bf16.msra.mxu0 0
      %1604 = vmatprep.subr.bf16.mxu0 0
      %1605 = vmatpush1.bf16.msra.mxu0 0
      %1606 = vmatprep.subr.bf16.mxu0 0
      %1607 = vmatpush1.bf16.msra.mxu0 0
      %1608 = vmatprep.subr.bf16.mxu0 0
      %1609 = vmatpush1.bf16.msra.mxu0 0
      %1610 = vmatprep.subr.bf16.mxu0 0
      %1611 = vmatpush1.bf16.msra.mxu0 0
      %1612 = vmatprep.subr.bf16.mxu0 0
      %1613 = vmatpush1.bf16.msra.mxu0 0
      %1614 = vmatprep.subr.bf16.mxu0 0
      %1615 = vmatpush1.bf16.msra.mxu0 0
      %1616 = vmatprep.subr.bf16.mxu0 0
      %1617 = vmatpush1.bf16.msra.mxu0 0
      %1618 = vmatprep.subr.bf16.mxu0 0
      %1619 = vmatpush1.bf16.msra.mxu0 0
      %1620 = vmatprep.subr.bf16.mxu0 0
      %1621 = vmatpush1.bf16.msra.mxu0 0
      %1622 = vmatprep.subr.bf16.mxu0 0
      %1623 = vmatpush1.bf16.msra.mxu0 0
      %1624 = vmatprep.subr.bf16.mxu0 0
      %1625 = vmatpush1.bf16.msra.mxu0 0
      %1626 = vmatprep.mubr.bf16.mxu0 0
      %1627 = vmatmul.mubr.bf16.gmra.mrb[0].mxu0 %v1583
      %v1628 = vpop.f32.mrb[0].mxu0
      %v1629 = vadd.f32 0.0, %v1628
      %v1630 = vpop.f32.mrb[0].mxu0
      %v1631 = vadd.f32 0.0, %v1630
      %v1632 = vpop.f32.mrb[0].mxu0
      %v1633 = vadd.f32 0.0, %v1632
      %v1634 = vpop.f32.mrb[0].mxu0
      %v1635 = vadd.f32 0.0, %v1634
      %1636 = vmatprep.mubr.bf16.mxu0 0
      %1637 = vmatmul.mubr.bf16.gmra.mrb[0].mxu0 %v1586
      %v1638 = vpop.f32.mrb[0].mxu0
      %v1639 = vadd.f32 0.0, %v1638
      %v1640 = vpop.f32.mrb[0].mxu0
      %v1641 = vadd.f32 0.0, %v1640
      %v1642 = vpop.f32.mrb[0].mxu0
      %v1643 = vadd.f32 0.0, %v1642
      %v1644 = vpop.f32.mrb[0].mxu0
      %v1645 = vadd.f32 0.0, %v1644
      %1646 = vmatprep.mubr.bf16.mxu0 0
      %1647 = vmatmul.mubr.bf16.gmra.mrb[0].mxu0 %v1589
      %v1648 = vpop.f32.mrb[0].mxu0
      %v1649 = vadd.f32 0.0, %v1648
      %v1650 = vpop.f32.mrb[0].mxu0
      %v1651 = vadd.f32 0.0, %v1650
      %v1652 = vpop.f32.mrb[0].mxu0
      %v1653 = vadd.f32 0.0, %v1652
      %v1654 = vpop.f32.mrb[0].mxu0
      %v1655 = vadd.f32 0.0, %v1654
      %1656 = vmatprep.mubr.bf16.mxu0 0
      %1657 = vmatmul.mubr.bf16.gmra.mrb[0].mxu0 %v1592
      %v1658 = vpop.f32.mrb[0].mxu0
      %v1659 = vadd.f32 0.0, %v1658
      %v1660 = vpop.f32.mrb[0].mxu0
      %v1661 = vadd.f32 0.0, %v1660
      %v1662 = vpop.f32.mrb[0].mxu0
      %v1663 = vadd.f32 0.0, %v1662
      %v1664 = vpop.f32.mrb[0].mxu0
      %v1665 = vadd.f32 0.0, %v1664
      %1666 = vdwg.mxu0
      %v1667 = vadd.f32 %v1530, %v1629
      %v1668 = vadd.f32 %v1531, %v1631
      %v1669 = vadd.f32 %v1532, %v1633
      %v1670 = vadd.f32 %v1533, %v1635
      %v1671 = vadd.f32 %v1534, %v1639
      %v1672 = vadd.f32 %v1535, %v1641
      %v1673 = vadd.f32 %v1536, %v1643
      %v1674 = vadd.f32 %v1537, %v1645
      %v1675 = vadd.f32 %v1538, %v1649
      %v1676 = vadd.f32 %v1539, %v1651
      %v1677 = vadd.f32 %v1540, %v1653
      %v1678 = vadd.f32 %v1541, %v1655
      %v1679 = vadd.f32 %v1542, %v1659
      %v1680 = vadd.f32 %v1543, %v1661
      %v1681 = vadd.f32 %v1544, %v1663
      %v1682 = vadd.f32 %v1545, %v1665
      %v1683 = vld [vmem:[#allocation2 + $0x19] sm:$0xff]
      %v1684 = vld [vmem:[#allocation2 + $0x21] sm:$0xff]
      %v1685 = vld [vmem:[#allocation2 + $0x29] sm:$0xff]
      %v1686 = vld [vmem:[#allocation2 + $0x31] sm:$0xff]
      %v1687 = vld [vmem:[#allocation2 + $0x39] sm:$0xff]
      %v1688 = vld [vmem:[#allocation2 + $0x41] sm:$0xff]
      %v1689 = vld [vmem:[#allocation2 + $0x49] sm:$0xff]
      %v1690 = vld [vmem:[#allocation2 + $0x51] sm:$0xff]
      %v1691 = vmul.f32 %v1683, %v819
      %v1692 = vmul.f32 %v1684, %v823
      %v1693 = vmul.f32 %v1685, %v827
      %v1694 = vmul.f32 %v1686, %v831
      %v1695 = vmul.f32 %v1687, %v835
      %v1696 = vmul.f32 %v1688, %v839
      %v1697 = vmul.f32 %v1689, %v843
      %v1698 = vmul.f32 %v1690, %v847
      %v1699 = vpack.c.bf16 %v1692, %v1691
      %v1700 = vpack.c.bf16 %v1694, %v1693
      %v1701 = vpack.c.bf16 %v1696, %v1695
      %v1702 = vpack.c.bf16 %v1698, %v1697
      %v1703 = vld [vmem:[%s4 + $0x100] sm:$0xff]
      %v1704 = vld [vmem:[%s4 + $0x108] sm:$0xff]
      %v1705 = vld [vmem:[%s4 + $0x110] sm:$0xff]
      %v1706 = vld [vmem:[%s4 + $0x118] sm:$0xff]
      %v1711 = vunpack.c.l.b16 %v1703
      %v1712 = vunpack.c.h.b16 %v1703
      %v1713 = vunpack.c.l.b16 %v1704
      %v1714 = vunpack.c.h.b16 %v1704
      %v1715 = vunpack.c.l.b16 %v1705
      %v1716 = vunpack.c.h.b16 %v1705
      %v1717 = vunpack.c.l.b16 %v1706
      %v1718 = vunpack.c.h.b16 %v1706
      %v1719 = vpack.c.b16 %v1713, %v1711
      %v1720 = vpack.c.b16 %v1714, %v1712
      %v1721 = vpack.c.b16 %v1717, %v1715
      %v1722 = vpack.c.b16 %v1718, %v1716
      %v1728 = vsel %vm486, %v1699, 0
      %v1731 = vsel %vm486, %v1700, 0
      %v1734 = vsel %vm486, %v1701, 0
      %v1737 = vsel %vm486, %v1702, 0
      %1739 = vmatprep.subr.bf16.mxu0 %v1720
      %1740 = vmatpush1.bf16.msra.mxu0 %v1719
      %1741 = vmatprep.subr.bf16.mxu0 %v1722
      %1742 = vmatpush1.bf16.msra.mxu0 %v1721
      %1743 = vmatprep.subr.bf16.mxu0 0
      %1744 = vmatpush1.bf16.msra.mxu0 0
      %1745 = vmatprep.subr.bf16.mxu0 0
      %1746 = vmatpush1.bf16.msra.mxu0 0
      %1747 = vmatprep.subr.bf16.mxu0 0
      %1748 = vmatpush1.bf16.msra.mxu0 0
      %1749 = vmatprep.subr.bf16.mxu0 0
      %1750 = vmatpush1.bf16.msra.mxu0 0
      %1751 = vmatprep.subr.bf16.mxu0 0
      %1752 = vmatpush1.bf16.msra.mxu0 0
      %1753 = vmatprep.subr.bf16.mxu0 0
      %1754 = vmatpush1.bf16.msra.mxu0 0
      %1755 = vmatprep.subr.bf16.mxu0 0
      %1756 = vmatpush1.bf16.msra.mxu0 0
      %1757 = vmatprep.subr.bf16.mxu0 0
      %1758 = vmatpush1.bf16.msra.mxu0 0
      %1759 = vmatprep.subr.bf16.mxu0 0
      %1760 = vmatpush1.bf16.msra.mxu0 0
      %1761 = vmatprep.subr.bf16.mxu0 0
      %1762 = vmatpush1.bf16.msra.mxu0 0
      %1763 = vmatprep.subr.bf16.mxu0 0
      %1764 = vmatpush1.bf16.msra.mxu0 0
      %1765 = vmatprep.subr.bf16.mxu0 0
      %1766 = vmatpush1.bf16.msra.mxu0 0
      %1767 = vmatprep.subr.bf16.mxu0 0
      %1768 = vmatpush1.bf16.msra.mxu0 0
      %1769 = vmatprep.subr.bf16.mxu0 0
      %1770 = vmatpush1.bf16.msra.mxu0 0
      %1771 = vmatprep.mubr.bf16.mxu0 0
      %1772 = vmatmul.mubr.bf16.gmra.mrb[0].mxu0 %v1728
      %v1773 = vpop.f32.mrb[0].mxu0
      %v1774 = vadd.f32 0.0, %v1773
      %v1775 = vpop.f32.mrb[0].mxu0
      %v1776 = vadd.f32 0.0, %v1775
      %v1777 = vpop.f32.mrb[0].mxu0
      %v1778 = vadd.f32 0.0, %v1777
      %v1779 = vpop.f32.mrb[0].mxu0
      %v1780 = vadd.f32 0.0, %v1779
      %1781 = vmatprep.mubr.bf16.mxu0 0
      %1782 = vmatmul.mubr.bf16.gmra.mrb[0].mxu0 %v1731
      %v1783 = vpop.f32.mrb[0].mxu0
      %v1784 = vadd.f32 0.0, %v1783
      %v1785 = vpop.f32.mrb[0].mxu0
      %v1786 = vadd.f32 0.0, %v1785
      %v1787 = vpop.f32.mrb[0].mxu0
      %v1788 = vadd.f32 0.0, %v1787
      %v1789 = vpop.f32.mrb[0].mxu0
      %v1790 = vadd.f32 0.0, %v1789
      %1791 = vmatprep.mubr.bf16.mxu0 0
      %1792 = vmatmul.mubr.bf16.gmra.mrb[0].mxu0 %v1734
      %v1793 = vpop.f32.mrb[0].mxu0
      %v1794 = vadd.f32 0.0, %v1793
      %v1795 = vpop.f32.mrb[0].mxu0
      %v1796 = vadd.f32 0.0, %v1795
      %v1797 = vpop.f32.mrb[0].mxu0
      %v1798 = vadd.f32 0.0, %v1797
      %v1799 = vpop.f32.mrb[0].mxu0
      %v1800 = vadd.f32 0.0, %v1799
      %1801 = vmatprep.mubr.bf16.mxu0 0
      %1802 = vmatmul.mubr.bf16.gmra.mrb[0].mxu0 %v1737
      %v1803 = vpop.f32.mrb[0].mxu0
      %v1804 = vadd.f32 0.0, %v1803
      %v1805 = vpop.f32.mrb[0].mxu0
      %v1806 = vadd.f32 0.0, %v1805
      %v1807 = vpop.f32.mrb[0].mxu0
      %v1808 = vadd.f32 0.0, %v1807
      %v1809 = vpop.f32.mrb[0].mxu0
      %v1810 = vadd.f32 0.0, %v1809
      %1811 = vdwg.mxu0
      %v1812 = vadd.f32 %v1667, %v1774
      %v1813 = vadd.f32 %v1668, %v1776
      %v1814 = vadd.f32 %v1669, %v1778
      %v1815 = vadd.f32 %v1670, %v1780
      %v1816 = vadd.f32 %v1671, %v1784
      %v1817 = vadd.f32 %v1672, %v1786
      %v1818 = vadd.f32 %v1673, %v1788
      %v1819 = vadd.f32 %v1674, %v1790
      %v1820 = vadd.f32 %v1675, %v1794
      %v1821 = vadd.f32 %v1676, %v1796
      %v1822 = vadd.f32 %v1677, %v1798
      %v1823 = vadd.f32 %v1678, %v1800
      %v1824 = vadd.f32 %v1679, %v1804
      %v1825 = vadd.f32 %v1680, %v1806
      %v1826 = vadd.f32 %v1681, %v1808
      %v1827 = vadd.f32 %v1682, %v1810
      %v1828 = vld [vmem:[%s5] sm:$0x3]
      %v1830 = vlaneseq
      %v1831 = vshrl.u32 %v1830, 7
      %v1832 = vsub.s32 0, %v1831
      %v1833 = vrot.slane %v1828, %v1832
      %v1834 = vlaneseq
      %v1835 = vshrl.u32 %v1834, 7
      %v1836 = vsub.s32 1, %v1835
      %v1837 = vrot.slane %v1828, %v1836
      %v1840 = vadd.f32 %v1812, %v1833
      %v1841 = vadd.f32 %v1813, %v1837
      %v1842 = vadd.f32 %v1814, %v1833
      %v1843 = vadd.f32 %v1815, %v1837
      %v1844 = vadd.f32 %v1816, %v1833
      %v1845 = vadd.f32 %v1817, %v1837
      %v1846 = vadd.f32 %v1818, %v1833
      %v1847 = vadd.f32 %v1819, %v1837
      %v1848 = vadd.f32 %v1820, %v1833
      %v1849 = vadd.f32 %v1821, %v1837
      %v1850 = vadd.f32 %v1822, %v1833
      %v1851 = vadd.f32 %v1823, %v1837
      %v1852 = vadd.f32 %v1824, %v1833
      %v1853 = vadd.f32 %v1825, %v1837
      %v1854 = vadd.f32 %v1826, %v1833
      %v1855 = vadd.f32 %v1827, %v1837
      %v1856 = vmax.f32 %v1840, 0.0
      %v1857 = vmax.f32 %v1841, 0.0
      %v1858 = vmax.f32 %v1842, 0.0
      %v1859 = vmax.f32 %v1843, 0.0
      %v1860 = vmax.f32 %v1844, 0.0
      %v1861 = vmax.f32 %v1845, 0.0
      %v1862 = vmax.f32 %v1846, 0.0
      %v1863 = vmax.f32 %v1847, 0.0
      %v1864 = vmax.f32 %v1848, 0.0
      %v1865 = vmax.f32 %v1849, 0.0
      %v1866 = vmax.f32 %v1850, 0.0
      %v1867 = vmax.f32 %v1851, 0.0
      %v1868 = vmax.f32 %v1852, 0.0
      %v1869 = vmax.f32 %v1853, 0.0
      %v1870 = vmax.f32 %v1854, 0.0
      %v1871 = vmax.f32 %v1855, 0.0
      %v1872 = vpack.c.bf16 %v1858, %v1856
      %v1873 = vpack.c.bf16 %v1859, %v1857
      %v1874 = vpack.c.bf16 %v1862, %v1860
      %v1875 = vpack.c.bf16 %v1863, %v1861
      %v1876 = vpack.c.bf16 %v1866, %v1864
      %v1877 = vpack.c.bf16 %v1867, %v1865
      %v1878 = vpack.c.bf16 %v1870, %v1868
      %v1879 = vpack.c.bf16 %v1871, %v1869
      %v1880 = vld [vmem:[%s6] sm:$0xf]
      %v1881 = vld [vmem:[%s6 + $0x4] sm:$0xf]
      %v1882 = vld [vmem:[%s6 + $0x8] sm:$0xf]
      %v1883 = vld [vmem:[%s6 + $0xc] sm:$0xf]
      %v1884 = vld [vmem:[%s6 + $0x10] sm:$0xf]
      %v1885 = vld [vmem:[%s6 + $0x14] sm:$0xf]
      %v1886 = vld [vmem:[%s6 + $0x18] sm:$0xf]
      %v1887 = vld [vmem:[%s6 + $0x1c] sm:$0xf]
      %v1888 = vld [vmem:[%s6 + $0x20] sm:$0xf]
      %v1889 = vld [vmem:[%s6 + $0x24] sm:$0xf]
      %v1890 = vld [vmem:[%s6 + $0x28] sm:$0xf]
      %v1891 = vld [vmem:[%s6 + $0x2c] sm:$0xf]
      %v1892 = vld [vmem:[%s6 + $0x30] sm:$0xf]
      %v1893 = vld [vmem:[%s6 + $0x34] sm:$0xf]
      %v1894 = vld [vmem:[%s6 + $0x38] sm:$0xf]
      %v1895 = vld [vmem:[%s6 + $0x3c] sm:$0xf]
      %v1896 = vld [vmem:[%s6 + $0x40] sm:$0xf]
      %v1897 = vld [vmem:[%s6 + $0x44] sm:$0xf]
      %v1898 = vld [vmem:[%s6 + $0x48] sm:$0xf]
      %v1899 = vld [vmem:[%s6 + $0x4c] sm:$0xf]
      %v1900 = vld [vmem:[%s6 + $0x50] sm:$0xf]
      %v1901 = vld [vmem:[%s6 + $0x54] sm:$0xf]
      %v1902 = vld [vmem:[%s6 + $0x58] sm:$0xf]
      %v1903 = vld [vmem:[%s6 + $0x5c] sm:$0xf]
      %v1904 = vld [vmem:[%s6 + $0x60] sm:$0xf]
      %v1905 = vld [vmem:[%s6 + $0x64] sm:$0xf]
      %v1906 = vld [vmem:[%s6 + $0x68] sm:$0xf]
      %v1907 = vld [vmem:[%s6 + $0x6c] sm:$0xf]
      %v1908 = vld [vmem:[%s6 + $0x70] sm:$0xf]
      %v1909 = vld [vmem:[%s6 + $0x74] sm:$0xf]
      %v1910 = vld [vmem:[%s6 + $0x78] sm:$0xf]
      %v1911 = vld [vmem:[%s6 + $0x7c] sm:$0xf]
      %v1912 = vld [vmem:[%s7] sm:$0x1]
      %v1914 = vlaneseq
      %v1915 = vshrl.u32 %v1914, 7
      %v1916 = vsub.s32 0, %v1915
      %v1917 = vrot.slane %v1912, %v1916
      %v1951 = vunpack.c.l.b16 %v1880
      %v1952 = vunpack.c.l.b16 %v1881
      %v1953 = vunpack.c.l.b16 %v1882
      %v1954 = vunpack.c.l.b16 %v1883
      %v1955 = vunpack.c.l.b16 %v1884
      %v1956 = vunpack.c.l.b16 %v1885
      %v1957 = vunpack.c.l.b16 %v1886
      %v1958 = vunpack.c.l.b16 %v1887
      %v1959 = vunpack.c.l.b16 %v1888
      %v1960 = vunpack.c.l.b16 %v1889
      %v1961 = vunpack.c.l.b16 %v1890
      %v1962 = vunpack.c.l.b16 %v1891
      %v1963 = vunpack.c.l.b16 %v1892
      %v1964 = vunpack.c.l.b16 %v1893
      %v1965 = vunpack.c.l.b16 %v1894
      %v1966 = vunpack.c.l.b16 %v1895
      %v1967 = vunpack.c.l.b16 %v1896
      %v1968 = vunpack.c.l.b16 %v1897
      %v1969 = vunpack.c.l.b16 %v1898
      %v1970 = vunpack.c.l.b16 %v1899
      %v1971 = vunpack.c.l.b16 %v1900
      %v1972 = vunpack.c.l.b16 %v1901
      %v1973 = vunpack.c.l.b16 %v1902
      %v1974 = vunpack.c.l.b16 %v1903
      %v1975 = vunpack.c.l.b16 %v1904
      %v1976 = vunpack.c.l.b16 %v1905
      %v1977 = vunpack.c.l.b16 %v1906
      %v1978 = vunpack.c.l.b16 %v1907
      %v1979 = vunpack.c.l.b16 %v1908
      %v1980 = vunpack.c.l.b16 %v1909
      %v1981 = vunpack.c.l.b16 %v1910
      %v1982 = vunpack.c.l.b16 %v1911
      %v1983 = vpack.c.b16 %v1952, %v1951
      %v1984 = vpack.c.b16 %v1954, %v1953
      %v1985 = vpack.c.b16 %v1956, %v1955
      %v1986 = vpack.c.b16 %v1958, %v1957
      %v1987 = vpack.c.b16 %v1960, %v1959
      %v1988 = vpack.c.b16 %v1962, %v1961
      %v1989 = vpack.c.b16 %v1964, %v1963
      %v1990 = vpack.c.b16 %v1966, %v1965
      %v1991 = vpack.c.b16 %v1968, %v1967
      %v1992 = vpack.c.b16 %v1970, %v1969
      %v1993 = vpack.c.b16 %v1972, %v1971
      %v1994 = vpack.c.b16 %v1974, %v1973
      %v1995 = vpack.c.b16 %v1976, %v1975
      %v1996 = vpack.c.b16 %v1978, %v1977
      %v1997 = vpack.c.b16 %v1980, %v1979
      %v1998 = vpack.c.b16 %v1982, %v1981
      %2015 = vmatprep.subr.bf16.mxu0 0
      %2016 = vmatpush1.bf16.msra.mxu0 %v1983
      %2017 = vmatprep.subr.bf16.mxu0 0
      %2018 = vmatpush1.bf16.msra.mxu0 %v1984
      %2019 = vmatprep.subr.bf16.mxu0 0
      %2020 = vmatpush1.bf16.msra.mxu0 %v1985
      %2021 = vmatprep.subr.bf16.mxu0 0
      %2022 = vmatpush1.bf16.msra.mxu0 %v1986
      %2023 = vmatprep.subr.bf16.mxu0 0
      %2024 = vmatpush1.bf16.msra.mxu0 %v1987
      %2025 = vmatprep.subr.bf16.mxu0 0
      %2026 = vmatpush1.bf16.msra.mxu0 %v1988
      %2027 = vmatprep.subr.bf16.mxu0 0
      %2028 = vmatpush1.bf16.msra.mxu0 %v1989
      %2029 = vmatprep.subr.bf16.mxu0 0
      %2030 = vmatpush1.bf16.msra.mxu0 %v1990
      %2031 = vmatprep.subr.bf16.mxu0 0
      %2032 = vmatpush1.bf16.msra.mxu0 %v1991
      %2033 = vmatprep.subr.bf16.mxu0 0
      %2034 = vmatpush1.bf16.msra.mxu0 %v1992
      %2035 = vmatprep.subr.bf16.mxu0 0
      %2036 = vmatpush1.bf16.msra.mxu0 %v1993
      %2037 = vmatprep.subr.bf16.mxu0 0
      %2038 = vmatpush1.bf16.msra.mxu0 %v1994
      %2039 = vmatprep.subr.bf16.mxu0 0
      %2040 = vmatpush1.bf16.msra.mxu0 %v1995
      %2041 = vmatprep.subr.bf16.mxu0 0
      %2042 = vmatpush1.bf16.msra.mxu0 %v1996
      %2043 = vmatprep.subr.bf16.mxu0 0
      %2044 = vmatpush1.bf16.msra.mxu0 %v1997
      %2045 = vmatprep.subr.bf16.mxu0 0
      %2046 = vmatpush1.bf16.msra.mxu0 %v1998
      %2047 = vmatprep.mubr.bf16.mxu0 %v1873
      %2048 = vmatmul.mubr.bf16.gmra.mrb[0].mxu0 %v1872
      %v2049 = vpop.f32.mrb[0].mxu0
      %v2050 = vadd.f32 %v1917, %v2049
      %v2051 = vpop.f32.mrb[0].mxu0
      %v2052 = vpop.f32.mrb[0].mxu0
      %v2053 = vadd.f32 %v1917, %v2052
      %v2054 = vpop.f32.mrb[0].mxu0
      %2055 = vmatprep.mubr.bf16.mxu0 %v1875
      %2056 = vmatmul.mubr.bf16.gmra.mrb[0].mxu0 %v1874
      %v2057 = vpop.f32.mrb[0].mxu0
      %v2058 = vadd.f32 %v1917, %v2057
      %v2059 = vpop.f32.mrb[0].mxu0
      %v2060 = vpop.f32.mrb[0].mxu0
      %v2061 = vadd.f32 %v1917, %v2060
      %v2062 = vpop.f32.mrb[0].mxu0
      %2063 = vmatprep.mubr.bf16.mxu0 %v1877
      %2064 = vmatmul.mubr.bf16.gmra.mrb[0].mxu0 %v1876
      %v2065 = vpop.f32.mrb[0].mxu0
      %v2066 = vadd.f32 %v1917, %v2065
      %v2067 = vpop.f32.mrb[0].mxu0
      %v2068 = vpop.f32.mrb[0].mxu0
      %v2069 = vadd.f32 %v1917, %v2068
      %v2070 = vpop.f32.mrb[0].mxu0
      %2071 = vmatprep.mubr.bf16.mxu0 %v1879
      %2072 = vmatmul.mubr.bf16.gmra.mrb[0].mxu0 %v1878
      %v2073 = vpop.f32.mrb[0].mxu0
      %v2074 = vadd.f32 %v1917, %v2073
      %v2075 = vpop.f32.mrb[0].mxu0
      %v2076 = vpop.f32.mrb[0].mxu0
      %v2077 = vadd.f32 %v1917, %v2076
      %v2078 = vpop.f32.mrb[0].mxu0
      %2079 = vdwg.mxu0
      %2080 = vst [vmem:[%s307] sm:$0xff] %v2050
      %2081 = vst [vmem:[%s307 + $0x8] sm:$0xff] %v2053
      %2082 = vst [vmem:[%s307 + $0x10] sm:$0xff] %v2058
      %2083 = vst [vmem:[%s307 + $0x18] sm:$0xff] %v2061
      %2084 = vst [vmem:[%s307 + $0x20] sm:$0xff] %v2066
      %2085 = vst [vmem:[%s307 + $0x28] sm:$0xff] %v2069
      %2086 = vst [vmem:[%s307 + $0x30] sm:$0xff] %v2074
      %2087 = vst [vmem:[%s307 + $0x38] sm:$0xff] %v2077
      %s2088 = smul.u32 8, %s19
      %p2089 = scmp.lt.s32.totalorder %s2088, 15
      %s2090 = scalar_select %p2089, %s2088, 15
      %s2091 = smul.addr %s2090, 8
      %s2092 = scalar_lea.vmem %s8, %s2091
      // Predicated region
      $region53: #{col_ro_pose_forward.1} parent=51 // pred_check
        %p2093 = pneg %p210
      $region54: #{col_ro_pose_forward.1} parent=51 // pred_check_branch
        %2095 = sbr.rel (%p2093) target = $region56
      $region55: #{col_ro_pose_forward.1} parent=51 // pred_region
        %s2096 = smul.u32 8, %s19
      $region56: #{col_ro_pose_forward.1} parent=51 // pred_fallthru
        _
    $region52: #{col_ro_pose_forward.1} parent=5 // pred_fallthru
      _
    %p2097 = scmp.le.s32.totalorder 2, %s14
    // Predicated region
    $region57: #{col_ro_pose_forward.1} parent=5 // pred_check
      %p2098 = pneg %p2097
    $region58: #{col_ro_pose_forward.1} parent=5 // pred_check_branch
      %2100 = sbr.rel (%p2098) target = $region60
    $region59: #{col_ro_pose_forward.1} parent=5 // pred_region
      %s2101 = ssub.s32 %s14, 2
      // Predicated region
      $region61: #{col_ro_pose_forward.1} parent=59 // pred_check
        %p2102 = pneg %p216
      $region62: #{col_ro_pose_forward.1} parent=59 // pred_check_branch
        %2104 = sbr.rel (%p2102) target = $region64
      $region63: #{col_ro_pose_forward.1} parent=59 // pred_region
        %s2105 = smul.u32 8, %s20
        %p2106 = scmp.lt.s32.totalorder %s2105, 15
        %s2107 = scalar_select %p2106, %s2105, 15
        %s2108 = smul.addr %s2107, 8
        %s2109 = scalar_lea.vmem %s8, %s2108
      $region64: #{col_ro_pose_forward.1} parent=59 // pred_fallthru
        _
    $region60: #{col_ro_pose_forward.1} parent=5 // pred_fallthru
      _
  $region6: #{col_ro_pose_forward.1} parent=0 // loop_footer
    %s18 = sadd.s32 1, %s14
  $region7: #{col_ro_pose_forward.1} parent=0 // loop_footer_branch
    %13 = sbr.rel target = $region3
  $region8: #{col_ro_pose_forward.1} parent=0 // loop_exit
    _

</llo_original>
